<compile_context>
chip_gen: v6e
topology: v6e:2x2x1
jax: 0.10.0
libtpu: 0.0.40
codegen_flags: <defaults>
</compile_context>

<pallas_src>
import functools

import jax
import jax.numpy as jnp
import numpy as np
from jax.experimental import pallas as pl
from jax.experimental.pallas import tpu as pltpu


def _round_up(a, b):
    return (a + b - 1) // b * b


def _vmem_limit_bytes():
    """Scoped-VMEM limit from the actual chip (v5e/v6e phys 128 MiB, v7x 64 MiB)."""
    try:
        cap = int(pltpu.get_tpu_info().vmem_capacity_bytes)
        if cap <= 0:
            raise ValueError("bad vmem capacity")
        return max(32 * 1024 * 1024, min(cap // 2, 96 * 1024 * 1024))
    except Exception:
        return 32 * 1024 * 1024


# ------------------------------ fused kernel -----------------------------------

def _inverted_residual_kernel(x_ref, w1_ref, s1_ref, b1_ref,
                              w2_ref, s2_ref, b2_ref,
                              w3_ref, s3_ref, b3_ref,
                              o_ref, *,
                              ksize, stride, pad, h, w, tile_h, wo, wo_c,
                              apply_residual):
    """One (batch, output-row-tile) step of the whole inverted-residual block.

    x_ref : (1, Hp, Wp, cin)   spatially zero-padded input image (f32, resident)
    w1_ref: (cin, cmid)  bf16  ; s1/b1: (1, cmid) f32   (expansion 1x1 + BN)
    w2_ref: (k*k, cmid)  f32   ; s2/b2: (1, cmid) f32   (depthwise taps + BN)
    w3_ref: (cmid, cout) bf16  ; s3/b3: (1, cout) f32   (projection 1x1 + BN)
    o_ref : (1, tile_h, wo, cout) f32  NHWC output row tile
    """
    cin = x_ref.shape[-1]
    cmid = w1_ref.shape[-1]
    cout = w3_ref.shape[-1]
    wp = x_ref.shape[2]
    rows_in = (tile_h - 1) * stride + ksize            # rows needed incl. halo

    row0 = pl.multiple_of(pl.program_id(1) * (tile_h * stride), tile_h * stride)

    # ---- stage 1: 1x1 expansion (MXU, bf16) + BN + ReLU, kept in VMEM --------
    xr = x_ref[0, pl.ds(row0, rows_in), :, :]          # (rows_in, Wp, cin)
    x2d = xr.reshape(rows_in * wp, cin).astype(jnp.bfloat16)
    h1 = jnp.dot(x2d, w1_ref[...], preferred_element_type=jnp.float32)
    h1 = jnp.maximum(h1 * s1_ref[...] + b1_ref[...], 0.0)
    h1 = h1.reshape(rows_in, wp, cmid)

    # Zero the depthwise 'same'-padding halo (bias + ReLU made it non-zero).
    rid = row0 + jax.lax.broadcasted_iota(jnp.int32, (rows_in, wp, 1), 0)
    cid = jax.lax.broadcasted_iota(jnp.int32, (rows_in, wp, 1), 1)
    valid = (rid >= pad) & (rid < h + pad) & (cid >= pad) & (cid < w + pad)
    h1 = jnp.where(valid, h1, 0.0)

    # ---- stage 2: KxK depthwise conv (VPU, f32) + BN + ReLU -------------------
    w2 = w2_ref[...]                                   # (k*k, cmid)
    acc = None
    for kh in range(ksize):                            # hoisted strided H slice
        xh = jax.lax.slice(h1, (kh, 0, 0),
                           (kh + stride * (tile_h - 1) + 1, wp, cmid),
                           (stride, 1, 1))             # (tile_h, Wp, cmid)
        for kw in range(ksize):
            xs = jax.lax.slice(xh, (0, kw, 0),
                               (tile_h, kw + stride * (wo_c - 1) + 1, cmid),
                               (1, stride, 1))         # (tile_h, wo_c, cmid)
            tap = w2[kh * ksize + kw:kh * ksize + kw + 1, :].reshape(1, 1, cmid)
            term = xs * tap
            acc = term if acc is None else acc + term  # init from first product
    h2 = jnp.maximum(acc * s2_ref[...].reshape(1, 1, cmid)
                     + b2_ref[...].reshape(1, 1, cmid), 0.0)

    # ---- stage 3: 1x1 projection (MXU, bf16) + BN (+ fused residual) ----------
    h2d = h2.reshape(tile_h * wo_c, cmid).astype(jnp.bfloat16)
    y = jnp.dot(h2d, w3_ref[...], preferred_element_type=jnp.float32)
    y = y * s3_ref[...] + b3_ref[...]
    y = y.reshape(tile_h, wo_c, cout)[:, :wo, :]

    if apply_residual:
        # residual re-uses the resident input block (stride==1, cin==cout)
        xres = x_ref[0, pl.ds(row0 + pad, tile_h), :, :]
        y = y + xres[:, pad:pad + w, :]

    o_ref[0] = y.astype(o_ref.dtype)


# --------------------------------- wrapper --------------------------------------

def _fold_bn(bn, eps=1e-5):
    """BatchNorm (inference) -> per-channel (scale, bias), shape (1, C)."""
    inv = bn["gamma"] * jax.lax.rsqrt(bn["var"] + eps)
    scale = inv.reshape(1, -1).astype(jnp.float32)
    bias = (bn["beta"] - bn["mean"] * inv).reshape(1, -1).astype(jnp.float32)
    return scale, bias


@functools.partial(jax.jit, static_argnames=("kernel_size", "stride",
                                              "apply_residual", "tile_h"))
def inverted_residual_forward(x, params, *, kernel_size, stride,
                              apply_residual, tile_h=8):
    n, cin, h, w = x.shape
    k = kernel_size
    pad = k // 2
    mid = params["w1"].shape[0]
    cout = params["w3"].shape[0]
    if apply_residual:
        assert stride == 1 and cin == cout, "residual needs stride=1 and cin==cout"

    ho = (h + 2 * pad - k) // stride + 1
    wo = (w + 2 * pad - k) // stride + 1
    tile_h = max(1, min(tile_h, ho))
    n_tiles = -(-ho // tile_h)
    # Sublane-friendly (multiple-of-8) widths so the in-kernel 3D<->2D reshapes
    # around the MXU matmuls are tile-aligned.
    wo_c = _round_up(wo, 8)
    wp_c = _round_up(max(w + 2 * pad, stride * (wo_c - 1) + k), 8)
    hp = (n_tiles * tile_h - 1) * stride + k

    # NCHW -> NHWC + spatial zero-pad (input-sized copy only; the expanded
    # activation never leaves VMEM).  Channels stay un-padded.
    x_nhwc = jnp.transpose(x.astype(jnp.float32), (0, 2, 3, 1))
    x_padded = jnp.pad(
        x_nhwc, ((0, 0), (pad, hp - h - pad), (pad, wp_c - w - pad), (0, 0)))

    # Weights: 1x1 convs as bf16 matmul operands, depthwise taps as f32.
    w1 = params["w1"].reshape(mid, cin).T.astype(jnp.bfloat16)     # (cin, mid)
    w2 = params["w2"].reshape(mid, k * k).T.astype(jnp.float32)    # (k*k, mid)
    w3 = params["w3"].reshape(cout, mid).T.astype(jnp.bfloat16)    # (mid, cout)
    s1, b1 = _fold_bn(params["bn1"])
    s2, b2 = _fold_bn(params["bn2"])
    s3, b3 = _fold_bn(params["bn3"])

    kernel = functools.partial(
        _inverted_residual_kernel, ksize=k, stride=stride, pad=pad, h=h, w=w,
        tile_h=tile_h, wo=wo, wo_c=wo_c, apply_residual=apply_residual)

    const2 = lambda i, r: (0, 0)
    out = pl.pallas_call(
        kernel,
        grid=(n, n_tiles),
        in_specs=[
            # per-image padded input, resident across the row-tile axis
            pl.BlockSpec((1, hp, wp_c, cin), lambda i, r: (i, 0, 0, 0)),
            pl.BlockSpec((cin, mid), const2),
            pl.BlockSpec((1, mid), const2),
            pl.BlockSpec((1, mid), const2),
            pl.BlockSpec((k * k, mid), const2),
            pl.BlockSpec((1, mid), const2),
            pl.BlockSpec((1, mid), const2),
            pl.BlockSpec((mid, cout), const2),
            pl.BlockSpec((1, cout), const2),
            pl.BlockSpec((1, cout), const2),
        ],
        out_specs=pl.BlockSpec((1, tile_h, wo, cout), lambda i, r: (i, r, 0, 0)),
        out_shape=jax.ShapeDtypeStruct((n, n_tiles * tile_h, wo, cout),
                                       jnp.float32),
        compiler_params=pltpu.CompilerParams(
            dimension_semantics=("parallel", "parallel"),
            vmem_limit_bytes=_vmem_limit_bytes()),
    )(x_padded, w1, s1, b1, w2, s2, b2, w3, s3, b3)

    out = out[:, :ho]                             # no-op when ho % tile_h == 0
    return jnp.transpose(out, (0, 3, 1, 2))       # NHWC -> NCHW


# ------------------------- pure-JAX reference (check) ---------------------------

def _reference_forward(x, params, *, kernel_size, stride, apply_residual, eps=1e-5):
    def bn(y, p):
        inv = p["gamma"] * jax.lax.rsqrt(p["var"] + eps)
        return (y * inv[None, :, None, None]
                + (p["beta"] - p["mean"] * inv)[None, :, None, None])

    pad = kernel_size // 2
    dn = ("NCHW", "OIHW", "NCHW")
    y = jax.lax.conv_general_dilated(x, params["w1"], (1, 1), "VALID",
                                     dimension_numbers=dn)
    y = jnp.maximum(bn(y, params["bn1"]), 0.0)
    y = jax.lax.conv_general_dilated(y, params["w2"], (stride, stride),
                                     [(pad, pad), (pad, pad)],
                                     dimension_numbers=dn,
                                     feature_group_count=params["w2"].shape[0])
    y = jnp.maximum(bn(y, params["bn2"]), 0.0)
    y = jax.lax.conv_general_dilated(y, params["w3"], (1, 1), "VALID",
                                     dimension_numbers=dn)
    y = bn(y, params["bn3"])
    if apply_residual:
        y = y + x
    return y


def init_params(key, in_ch, out_ch, kernel_size, expansion_factor):
    mid = in_ch * expansion_factor
    ks = jax.random.split(key, 6)

    def bn_params(k, c):
        kg, kb = jax.random.split(k)
        return dict(gamma=1.0 + 0.1 * jax.random.normal(kg, (c,), jnp.float32),
                    beta=0.1 * jax.random.normal(kb, (c,), jnp.float32),
                    mean=jnp.zeros((c,), jnp.float32),
                    var=jnp.ones((c,), jnp.float32))

    return dict(
        w1=jax.random.normal(ks[0], (mid, in_ch, 1, 1), jnp.float32)
        / np.sqrt(in_ch),
        w2=jax.random.normal(ks[1], (mid, 1, kernel_size, kernel_size),
                             jnp.float32) / kernel_size,
        w3=jax.random.normal(ks[2], (out_ch, mid, 1, 1), jnp.float32)
        / np.sqrt(mid),
        bn1=bn_params(ks[3], mid),
        bn2=bn_params(ks[4], mid),
        bn3=bn_params(ks[5], out_ch),
    )


# ------------------------------------ main --------------------------------------

if __name__ == "__main__":
    key = jax.random.PRNGKey(0)
    kp, kx = jax.random.split(key)

    batch, in_ch, out_ch, h, w = 2, 4, 4, 16, 16
    kernel_size, stride, expansion = 3, 1, 6
    apply_residual = (in_ch == out_ch and stride == 1)

    params = init_params(kp, in_ch, out_ch, kernel_size, expansion)
    x = jax.random.normal(kx, (batch, in_ch, h, w), jnp.float32)

    out = inverted_residual_forward(x, params, kernel_size=kernel_size,
                                    stride=stride,
                                    apply_residual=apply_residual)
    out = jax.block_until_ready(out)

    ref = jax.block_until_ready(
        _reference_forward(x, params, kernel_size=kernel_size, stride=stride,
                           apply_residual=apply_residual))

    assert out.shape == ref.shape == (batch, out_ch, h, w)
    # tolerance sized for the bf16 MXU path (f32 accumulation, f32 everywhere else)
    np.testing.assert_allclose(np.asarray(out), np.asarray(ref),
                               rtol=2e-2, atol=2e-2)
    assert np.isfinite(np.asarray(out)).all()
    print("KERNEL_OK")
</pallas_src>

<mosaic_0001>
module attributes {stable_mosaic.version = 11 : i64} {
  func.func @_inverted_residual_kernel(%arg0: i32, %arg1: i32, %arg2: memref<1x18x24x4xf32, #tpu.memory_space<vmem>>, %arg3: memref<4x24xbf16, #tpu.memory_space<vmem>>, %arg4: memref<1x24xf32, #tpu.memory_space<vmem>>, %arg5: memref<1x24xf32, #tpu.memory_space<vmem>>, %arg6: memref<9x24xf32, #tpu.memory_space<vmem>>, %arg7: memref<1x24xf32, #tpu.memory_space<vmem>>, %arg8: memref<1x24xf32, #tpu.memory_space<vmem>>, %arg9: memref<24x4xbf16, #tpu.memory_space<vmem>>, %arg10: memref<1x4xf32, #tpu.memory_space<vmem>>, %arg11: memref<1x4xf32, #tpu.memory_space<vmem>>, %arg12: memref<1x8x16x4xf32, #tpu.memory_space<vmem>>) attributes {dimension_semantics = [#tpu.dimension_semantics<parallel>, #tpu.dimension_semantics<parallel>], iteration_bounds = array<i64: 2, 2>, scalar_prefetch = 0 : i64, scratch_operands = 0 : i64, tpu.core_type = #tpu.core_type<tc>, window_params = [{transform_indices = @transform_0, window_bounds = array<i64: 1, 18, 24, 4>}, {pipeline_mode = #tpu.pipeline_mode<synchronous>, transform_indices = @transform_1, window_bounds = array<i64: 4, 24>}, {pipeline_mode = #tpu.pipeline_mode<synchronous>, transform_indices = @transform_2, window_bounds = array<i64: 1, 24>}, {pipeline_mode = #tpu.pipeline_mode<synchronous>, transform_indices = @transform_3, window_bounds = array<i64: 1, 24>}, {pipeline_mode = #tpu.pipeline_mode<synchronous>, transform_indices = @transform_4, window_bounds = array<i64: 9, 24>}, {pipeline_mode = #tpu.pipeline_mode<synchronous>, transform_indices = @transform_5, window_bounds = array<i64: 1, 24>}, {pipeline_mode = #tpu.pipeline_mode<synchronous>, transform_indices = @transform_6, window_bounds = array<i64: 1, 24>}, {pipeline_mode = #tpu.pipeline_mode<synchronous>, transform_indices = @transform_7, window_bounds = array<i64: 24, 4>}, {pipeline_mode = #tpu.pipeline_mode<synchronous>, transform_indices = @transform_8, window_bounds = array<i64: 1, 4>}, {pipeline_mode = #tpu.pipeline_mode<synchronous>, transform_indices = @transform_9, window_bounds = array<i64: 1, 4>}, {transform_indices = @transform_10, window_bounds = array<i64: 1, 8, 16, 4>}]} {
    %c8_i32 = arith.constant 8 : i32
    %0 = arith.muli %arg1, %c8_i32 : i32
    %1 = tpu.assume_multiple %0, 8 : i32
    %c0 = arith.constant 0 : index
    %2 = arith.index_cast %1 : i32 to index
    %c0_0 = arith.constant 0 : index
    %c0_1 = arith.constant 0 : index
    %3 = vector.load %arg2[%c0, %2, %c0_0, %c0_1] : memref<1x18x24x4xf32, #tpu.memory_space<vmem>>, vector<1x10x24x4xf32>
    %4 = vector.shape_cast %3 : vector<1x10x24x4xf32> to vector<10x24x4xf32>
    %5 = vector.shape_cast %4 : vector<10x24x4xf32> to vector<240x4xf32>
    %6 = arith.truncf %5 : vector<240x4xf32> to vector<240x4xbf16>
    %c0_2 = arith.constant 0 : index
    %c0_3 = arith.constant 0 : index
    %7 = vector.load %arg3[%c0_2, %c0_3] : memref<4x24xbf16, #tpu.memory_space<vmem>>, vector<4x24xbf16>
    %cst = arith.constant dense<0.000000e+00> : vector<240x24xf32>
    %8 = tpu.matmul %6, %7, %cst {dimension_numbers = #tpu.dot_dimension_numbers<[1], [0], [0], [1], [0, 0, 1, 1], [], []>} : vector<240x4xbf16>, vector<4x24xbf16>, vector<240x24xf32> -> vector<240x24xf32>
    %c0_4 = arith.constant 0 : index
    %c0_5 = arith.constant 0 : index
    %9 = vector.load %arg4[%c0_4, %c0_5] : memref<1x24xf32, #tpu.memory_space<vmem>>, vector<1x24xf32>
    %10 = vector.broadcast %9 : vector<1x24xf32> to vector<240x24xf32>
    %11 = arith.mulf %8, %10 : vector<240x24xf32>
    %c0_6 = arith.constant 0 : index
    %c0_7 = arith.constant 0 : index
    %12 = vector.load %arg5[%c0_6, %c0_7] : memref<1x24xf32, #tpu.memory_space<vmem>>, vector<1x24xf32>
    %13 = vector.broadcast %12 : vector<1x24xf32> to vector<240x24xf32>
    %14 = arith.addf %11, %13 : vector<240x24xf32>
    %cst_8 = arith.constant 0.000000e+00 : f32
    %15 = vector.broadcast %cst_8 : f32 to vector<240x24xf32>
    %16 = arith.maximumf %14, %15 : vector<240x24xf32>
    %17 = vector.shape_cast %16 : vector<240x24xf32> to vector<10x24x24xf32>
    %18 = tpu.iota {dimensions = array<i32: 0>} : vector<10x24x1xi32>
    %19 = vector.broadcast %1 : i32 to vector<10x24x1xi32>
    %20 = arith.addi %19, %18 : vector<10x24x1xi32>
    %21 = tpu.iota {dimensions = array<i32: 1>} : vector<10x24x1xi32>
    %c1_i32 = arith.constant 1 : i32
    %22 = vector.broadcast %c1_i32 : i32 to vector<10x24x1xi32>
    %23 = arith.cmpi sge, %20, %22 : vector<10x24x1xi32>
    %c17_i32 = arith.constant 17 : i32
    %24 = vector.broadcast %c17_i32 : i32 to vector<10x24x1xi32>
    %25 = arith.cmpi slt, %20, %24 : vector<10x24x1xi32>
    %26 = arith.andi %23, %25 : vector<10x24x1xi1>
    %c1_i32_9 = arith.constant 1 : i32
    %27 = vector.broadcast %c1_i32_9 : i32 to vector<10x24x1xi32>
    %28 = arith.cmpi sge, %21, %27 : vector<10x24x1xi32>
    %29 = arith.andi %26, %28 : vector<10x24x1xi1>
    %c17_i32_10 = arith.constant 17 : i32
    %30 = vector.broadcast %c17_i32_10 : i32 to vector<10x24x1xi32>
    %31 = arith.cmpi slt, %21, %30 : vector<10x24x1xi32>
    %32 = arith.andi %29, %31 : vector<10x24x1xi1>
    %cst_11 = arith.constant 0.000000e+00 : f32
    %33 = vector.shape_cast %32 : vector<10x24x1xi1> to vector<10x24x1xi1>
    %34 = vector.broadcast %33 : vector<10x24x1xi1> to vector<10x24x24xi1>
    %35 = vector.broadcast %cst_11 : f32 to vector<10x24x24xf32>
    %36 = arith.select %34, %17, %35 : vector<10x24x24xi1>, vector<10x24x24xf32>
    %c0_12 = arith.constant 0 : index
    %c0_13 = arith.constant 0 : index
    %37 = vector.load %arg6[%c0_12, %c0_13] : memref<9x24xf32, #tpu.memory_space<vmem>>, vector<9x24xf32>
    %38 = vector.extract_strided_slice %36 {offsets = [0, 0, 0], sizes = [8, 24, 24], strides = [1, 1, 1]} : vector<10x24x24xf32> to vector<8x24x24xf32>
    %39 = vector.extract_strided_slice %38 {offsets = [0, 0, 0], sizes = [8, 16, 24], strides = [1, 1, 1]} : vector<8x24x24xf32> to vector<8x16x24xf32>
    %40 = vector.extract_strided_slice %37 {offsets = [0, 0], sizes = [1, 24], strides = [1, 1]} : vector<9x24xf32> to vector<1x24xf32>
    %41 = vector.shape_cast %40 : vector<1x24xf32> to vector<1x1x24xf32>
    %42 = vector.broadcast %41 : vector<1x1x24xf32> to vector<8x16x24xf32>
    %43 = arith.mulf %39, %42 : vector<8x16x24xf32>
    %44 = vector.extract_strided_slice %38 {offsets = [0, 1, 0], sizes = [8, 16, 24], strides = [1, 1, 1]} : vector<8x24x24xf32> to vector<8x16x24xf32>
    %45 = vector.extract_strided_slice %37 {offsets = [1, 0], sizes = [1, 24], strides = [1, 1]} : vector<9x24xf32> to vector<1x24xf32>
    %46 = vector.shape_cast %45 : vector<1x24xf32> to vector<1x1x24xf32>
    %47 = vector.broadcast %46 : vector<1x1x24xf32> to vector<8x16x24xf32>
    %48 = arith.mulf %44, %47 : vector<8x16x24xf32>
    %49 = arith.addf %43, %48 : vector<8x16x24xf32>
    %50 = vector.extract_strided_slice %38 {offsets = [0, 2, 0], sizes = [8, 16, 24], strides = [1, 1, 1]} : vector<8x24x24xf32> to vector<8x16x24xf32>
    %51 = vector.extract_strided_slice %37 {offsets = [2, 0], sizes = [1, 24], strides = [1, 1]} : vector<9x24xf32> to vector<1x24xf32>
    %52 = vector.shape_cast %51 : vector<1x24xf32> to vector<1x1x24xf32>
    %53 = vector.broadcast %52 : vector<1x1x24xf32> to vector<8x16x24xf32>
    %54 = arith.mulf %50, %53 : vector<8x16x24xf32>
    %55 = arith.addf %49, %54 : vector<8x16x24xf32>
    %56 = vector.extract_strided_slice %36 {offsets = [1, 0, 0], sizes = [8, 24, 24], strides = [1, 1, 1]} : vector<10x24x24xf32> to vector<8x24x24xf32>
    %57 = vector.extract_strided_slice %56 {offsets = [0, 0, 0], sizes = [8, 16, 24], strides = [1, 1, 1]} : vector<8x24x24xf32> to vector<8x16x24xf32>
    %58 = vector.extract_strided_slice %37 {offsets = [3, 0], sizes = [1, 24], strides = [1, 1]} : vector<9x24xf32> to vector<1x24xf32>
    %59 = vector.shape_cast %58 : vector<1x24xf32> to vector<1x1x24xf32>
    %60 = vector.broadcast %59 : vector<1x1x24xf32> to vector<8x16x24xf32>
    %61 = arith.mulf %57, %60 : vector<8x16x24xf32>
    %62 = arith.addf %55, %61 : vector<8x16x24xf32>
    %63 = vector.extract_strided_slice %56 {offsets = [0, 1, 0], sizes = [8, 16, 24], strides = [1, 1, 1]} : vector<8x24x24xf32> to vector<8x16x24xf32>
    %64 = vector.extract_strided_slice %37 {offsets = [4, 0], sizes = [1, 24], strides = [1, 1]} : vector<9x24xf32> to vector<1x24xf32>
    %65 = vector.shape_cast %64 : vector<1x24xf32> to vector<1x1x24xf32>
    %66 = vector.broadcast %65 : vector<1x1x24xf32> to vector<8x16x24xf32>
    %67 = arith.mulf %63, %66 : vector<8x16x24xf32>
    %68 = arith.addf %62, %67 : vector<8x16x24xf32>
    %69 = vector.extract_strided_slice %56 {offsets = [0, 2, 0], sizes = [8, 16, 24], strides = [1, 1, 1]} : vector<8x24x24xf32> to vector<8x16x24xf32>
    %70 = vector.extract_strided_slice %37 {offsets = [5, 0], sizes = [1, 24], strides = [1, 1]} : vector<9x24xf32> to vector<1x24xf32>
    %71 = vector.shape_cast %70 : vector<1x24xf32> to vector<1x1x24xf32>
    %72 = vector.broadcast %71 : vector<1x1x24xf32> to vector<8x16x24xf32>
    %73 = arith.mulf %69, %72 : vector<8x16x24xf32>
    %74 = arith.addf %68, %73 : vector<8x16x24xf32>
    %75 = vector.extract_strided_slice %36 {offsets = [2, 0, 0], sizes = [8, 24, 24], strides = [1, 1, 1]} : vector<10x24x24xf32> to vector<8x24x24xf32>
    %76 = vector.extract_strided_slice %75 {offsets = [0, 0, 0], sizes = [8, 16, 24], strides = [1, 1, 1]} : vector<8x24x24xf32> to vector<8x16x24xf32>
    %77 = vector.extract_strided_slice %37 {offsets = [6, 0], sizes = [1, 24], strides = [1, 1]} : vector<9x24xf32> to vector<1x24xf32>
    %78 = vector.shape_cast %77 : vector<1x24xf32> to vector<1x1x24xf32>
    %79 = vector.broadcast %78 : vector<1x1x24xf32> to vector<8x16x24xf32>
    %80 = arith.mulf %76, %79 : vector<8x16x24xf32>
    %81 = arith.addf %74, %80 : vector<8x16x24xf32>
    %82 = vector.extract_strided_slice %75 {offsets = [0, 1, 0], sizes = [8, 16, 24], strides = [1, 1, 1]} : vector<8x24x24xf32> to vector<8x16x24xf32>
    %83 = vector.extract_strided_slice %37 {offsets = [7, 0], sizes = [1, 24], strides = [1, 1]} : vector<9x24xf32> to vector<1x24xf32>
    %84 = vector.shape_cast %83 : vector<1x24xf32> to vector<1x1x24xf32>
    %85 = vector.broadcast %84 : vector<1x1x24xf32> to vector<8x16x24xf32>
    %86 = arith.mulf %82, %85 : vector<8x16x24xf32>
    %87 = arith.addf %81, %86 : vector<8x16x24xf32>
    %88 = vector.extract_strided_slice %75 {offsets = [0, 2, 0], sizes = [8, 16, 24], strides = [1, 1, 1]} : vector<8x24x24xf32> to vector<8x16x24xf32>
    %89 = vector.extract_strided_slice %37 {offsets = [8, 0], sizes = [1, 24], strides = [1, 1]} : vector<9x24xf32> to vector<1x24xf32>
    %90 = vector.shape_cast %89 : vector<1x24xf32> to vector<1x1x24xf32>
    %91 = vector.broadcast %90 : vector<1x1x24xf32> to vector<8x16x24xf32>
    %92 = arith.mulf %88, %91 : vector<8x16x24xf32>
    %93 = arith.addf %87, %92 : vector<8x16x24xf32>
    %c0_14 = arith.constant 0 : index
    %c0_15 = arith.constant 0 : index
    %94 = vector.load %arg7[%c0_14, %c0_15] : memref<1x24xf32, #tpu.memory_space<vmem>>, vector<1x24xf32>
    %95 = vector.shape_cast %94 : vector<1x24xf32> to vector<1x1x24xf32>
    %96 = vector.broadcast %95 : vector<1x1x24xf32> to vector<8x16x24xf32>
    %97 = arith.mulf %93, %96 : vector<8x16x24xf32>
    %c0_16 = arith.constant 0 : index
    %c0_17 = arith.constant 0 : index
    %98 = vector.load %arg8[%c0_16, %c0_17] : memref<1x24xf32, #tpu.memory_space<vmem>>, vector<1x24xf32>
    %99 = vector.shape_cast %98 : vector<1x24xf32> to vector<1x1x24xf32>
    %100 = vector.broadcast %99 : vector<1x1x24xf32> to vector<8x16x24xf32>
    %101 = arith.addf %97, %100 : vector<8x16x24xf32>
    %cst_18 = arith.constant 0.000000e+00 : f32
    %102 = vector.broadcast %cst_18 : f32 to vector<8x16x24xf32>
    %103 = arith.maximumf %101, %102 : vector<8x16x24xf32>
    %104 = vector.shape_cast %103 : vector<8x16x24xf32> to vector<128x24xf32>
    %105 = arith.truncf %104 : vector<128x24xf32> to vector<128x24xbf16>
    %c0_19 = arith.constant 0 : index
    %c0_20 = arith.constant 0 : index
    %106 = vector.load %arg9[%c0_19, %c0_20] : memref<24x4xbf16, #tpu.memory_space<vmem>>, vector<24x4xbf16>
    %cst_21 = arith.constant dense<0.000000e+00> : vector<128x4xf32>
    %107 = tpu.matmul %105, %106, %cst_21 {dimension_numbers = #tpu.dot_dimension_numbers<[1], [0], [0], [1], [0, 0, 1, 1], [], []>} : vector<128x24xbf16>, vector<24x4xbf16>, vector<128x4xf32> -> vector<128x4xf32>
    %c0_22 = arith.constant 0 : index
    %c0_23 = arith.constant 0 : index
    %108 = vector.load %arg10[%c0_22, %c0_23] : memref<1x4xf32, #tpu.memory_space<vmem>>, vector<1x4xf32>
    %109 = vector.broadcast %108 : vector<1x4xf32> to vector<128x4xf32>
    %110 = arith.mulf %107, %109 : vector<128x4xf32>
    %c0_24 = arith.constant 0 : index
    %c0_25 = arith.constant 0 : index
    %111 = vector.load %arg11[%c0_24, %c0_25] : memref<1x4xf32, #tpu.memory_space<vmem>>, vector<1x4xf32>
    %112 = vector.broadcast %111 : vector<1x4xf32> to vector<128x4xf32>
    %113 = arith.addf %110, %112 : vector<128x4xf32>
    %114 = vector.shape_cast %113 : vector<128x4xf32> to vector<8x16x4xf32>
    %c1_i32_26 = arith.constant 1 : i32
    %115 = arith.addi %1, %c1_i32_26 : i32
    %c0_27 = arith.constant 0 : index
    %116 = arith.index_cast %115 : i32 to index
    %c0_28 = arith.constant 0 : index
    %c0_29 = arith.constant 0 : index
    %117 = vector.load %arg2[%c0_27, %116, %c0_28, %c0_29] : memref<1x18x24x4xf32, #tpu.memory_space<vmem>>, vector<1x8x24x4xf32>
    %118 = vector.shape_cast %117 : vector<1x8x24x4xf32> to vector<8x24x4xf32>
    %119 = vector.extract_strided_slice %118 {offsets = [0, 1, 0], sizes = [8, 16, 4], strides = [1, 1, 1]} : vector<8x24x4xf32> to vector<8x16x4xf32>
    %120 = arith.addf %114, %119 : vector<8x16x4xf32>
    %c0_30 = arith.constant 0 : index
    %c0_31 = arith.constant 0 : index
    %c0_32 = arith.constant 0 : index
    %c0_33 = arith.constant 0 : index
    %121 = vector.load %arg12[%c0_30, %c0_31, %c0_32, %c0_33] : memref<1x8x16x4xf32, #tpu.memory_space<vmem>>, vector<1x8x16x4xf32>
    %122 = vector.shape_cast %121 : vector<1x8x16x4xf32> to vector<8x16x4xf32>
    %123 = vector.shape_cast %120 : vector<8x16x4xf32> to vector<1x8x16x4xf32>
    tpu.vector_store %arg12[%c0_30, %c0_31, %c0_32, %c0_33], %123 {strides = array<i32>} : memref<1x8x16x4xf32, #tpu.memory_space<vmem>>, vector<1x8x16x4xf32>,
    return
  }
  func.func @transform_0(%arg0: i32, %arg1: i32) -> (i32, i32, i32, i32) {
    %c0_i32 = arith.constant 0 : i32
    %c0_i32_0 = arith.constant 0 : i32
    %c0_i32_1 = arith.constant 0 : i32
    %c0_i32_2 = arith.constant 0 : i32
    return %arg0, %c0_i32, %c0_i32_0, %c0_i32_1 : i32, i32, i32, i32
  }
  func.func @transform_1(%arg0: i32, %arg1: i32) -> (i32, i32) {
    %c0_i32 = arith.constant 0 : i32
    %c0_i32_0 = arith.constant 0 : i32
    %c0_i32_1 = arith.constant 0 : i32
    return %c0_i32, %c0_i32_0 : i32, i32
  }
  func.func @transform_2(%arg0: i32, %arg1: i32) -> (i32, i32) {
    %c0_i32 = arith.constant 0 : i32
    %c0_i32_0 = arith.constant 0 : i32
    %c0_i32_1 = arith.constant 0 : i32
    return %c0_i32, %c0_i32_0 : i32, i32
  }
  func.func @transform_3(%arg0: i32, %arg1: i32) -> (i32, i32) {
    %c0_i32 = arith.constant 0 : i32
    %c0_i32_0 = arith.constant 0 : i32
    %c0_i32_1 = arith.constant 0 : i32
    return %c0_i32, %c0_i32_0 : i32, i32
  }
  func.func @transform_4(%arg0: i32, %arg1: i32) -> (i32, i32) {
    %c0_i32 = arith.constant 0 : i32
    %c0_i32_0 = arith.constant 0 : i32
    %c0_i32_1 = arith.constant 0 : i32
    return %c0_i32, %c0_i32_0 : i32, i32
  }
  func.func @transform_5(%arg0: i32, %arg1: i32) -> (i32, i32) {
    %c0_i32 = arith.constant 0 : i32
    %c0_i32_0 = arith.constant 0 : i32
    %c0_i32_1 = arith.constant 0 : i32
    return %c0_i32, %c0_i32_0 : i32, i32
  }
  func.func @transform_6(%arg0: i32, %arg1: i32) -> (i32, i32) {
    %c0_i32 = arith.constant 0 : i32
    %c0_i32_0 = arith.constant 0 : i32
    %c0_i32_1 = arith.constant 0 : i32
    return %c0_i32, %c0_i32_0 : i32, i32
  }
  func.func @transform_7(%arg0: i32, %arg1: i32) -> (i32, i32) {
    %c0_i32 = arith.constant 0 : i32
    %c0_i32_0 = arith.constant 0 : i32
    %c0_i32_1 = arith.constant 0 : i32
    return %c0_i32, %c0_i32_0 : i32, i32
  }
  func.func @transform_8(%arg0: i32, %arg1: i32) -> (i32, i32) {
    %c0_i32 = arith.constant 0 : i32
    %c0_i32_0 = arith.constant 0 : i32
    %c0_i32_1 = arith.constant 0 : i32
    return %c0_i32, %c0_i32_0 : i32, i32
  }
  func.func @transform_9(%arg0: i32, %arg1: i32) -> (i32, i32) {
    %c0_i32 = arith.constant 0 : i32
    %c0_i32_0 = arith.constant 0 : i32
    %c0_i32_1 = arith.constant 0 : i32
    return %c0_i32, %c0_i32_0 : i32, i32
  }
  func.func @transform_10(%arg0: i32, %arg1: i32) -> (i32, i32, i32, i32) {
    %c0_i32 = arith.constant 0 : i32
    %c0_i32_0 = arith.constant 0 : i32
    %c0_i32_1 = arith.constant 0 : i32
    return %arg0, %arg1, %c0_i32, %c0_i32_0 : i32, i32, i32, i32
  }
}

</mosaic_0001>

<llo_original>
// kernel: inverted_residual_forward.1
$region0: #{inverted_residual_forward.1}
  #allocation0 [shape = 'u32[]', space=smem, size = 0x4, offset = 0x4, fixed_abs, tag = 'smem constant byte address 0x4 - core index']
  #allocation1 [shape = 'u32[144,128]{1,0:T(1,128)}', space=vmem, size = 0x12000, scoped, tag = 'internal scratch']
  %s0 = inlined_call_operand.vmem [shape: f32[2,18,24,4], index: 0, kind: input, shape index: {}]
  %s1 = inlined_call_operand.vmem [shape: bf16[4,24], index: 1, kind: input, shape index: {}]
  %s2 = inlined_call_operand.vmem [shape: f32[1,24], index: 2, kind: input, shape index: {}]
  %s3 = inlined_call_operand.vmem [shape: f32[1,24], index: 3, kind: input, shape index: {}]
  %s4 = inlined_call_operand.vmem [shape: f32[9,24], index: 4, kind: input, shape index: {}]
  %s5 = inlined_call_operand.vmem [shape: f32[1,24], index: 5, kind: input, shape index: {}]
  %s6 = inlined_call_operand.vmem [shape: f32[1,24], index: 6, kind: input, shape index: {}]
  %s7 = inlined_call_operand.vmem [shape: bf16[24,4], index: 7, kind: input, shape index: {}]
  %s8 = inlined_call_operand.vmem [shape: f32[1,4], index: 8, kind: input, shape index: {}]
  %s9 = inlined_call_operand.vmem [shape: f32[1,4], index: 9, kind: input, shape index: {}]
  %s10 = inlined_call_operand.vmem [shape: f32[2,16,16,4], index: 10, kind: output, shape index: {}]
  %s11 = sld [smem:[#allocation0]]
  $region73: #{inverted_residual_forward.1} parent=0
    _
  %s13 = ssub.s32 1, %s11
  %s14 = scalar_select 0, %s13, %s11
  loop: start=0, step=1, limit=6
  $region2: #{inverted_residual_forward.1} parent=0 // loop_pre_header
    _
  $region3: #{inverted_residual_forward.1} parent=0 // loop_header
    %s16 = sphi 0, %s20
    %p17 = scmp.ge.s32.totalorder %s16, 6
    %s23 = sphi 0, %s35
    %s24 = sphi 0, %s31
    %s25 = sphi 0, %s23
    %s26 = sphi 0, %s24
    %s27 = sphi 0, %s25
    %s28 = sphi 0, %s26
    %s38 = sphi 0, %s40
    %s41 = sphi 0, %s38
    %s42 = sphi 0, %s41
    %s58 = sphi 0, %s42
    %s62 = sphi 0, %s62
    %s64 = sphi 0, %s62
    %s65 = sphi 0, %s64
    %s79 = sphi 0, %s65
    %s83 = sphi 0, %s83
    %s85 = sphi 0, %s83
    %s86 = sphi 0, %s85
    %s100 = sphi 0, %s86
    %s104 = sphi 0, %s104
    %s106 = sphi 0, %s104
    %s107 = sphi 0, %s106
    %s121 = sphi 0, %s107
    %s125 = sphi 0, %s125
    %s127 = sphi 0, %s125
    %s128 = sphi 0, %s127
    %s142 = sphi 0, %s128
    %s146 = sphi 0, %s146
    %s148 = sphi 0, %s146
    %s149 = sphi 0, %s148
    %s163 = sphi 0, %s149
    %s167 = sphi 0, %s167
    %s169 = sphi 0, %s167
    %s170 = sphi 0, %s169
    %s184 = sphi 0, %s170
    %s188 = sphi 0, %s188
    %s190 = sphi 0, %s188
    %s191 = sphi 0, %s190
    %s205 = sphi 0, %s191
    %s209 = sphi 0, %s209
    %s211 = sphi 0, %s209
    %s212 = sphi 0, %s211
    %s226 = sphi 0, %s212
    %s230 = sphi 0, %s230
    %s232 = sphi 0, %s230
    %s233 = sphi 0, %s232
    %s247 = sphi 0, %s233
    %s255 = sphi 0, %s257
    %s258 = sphi 0, %s255
    %s259 = sphi 0, %s258
    %s275 = sphi 0, %s259
  $region4: #{inverted_residual_forward.1} parent=0 // loop_header_branch
    %19 = sbr.rel (%p17) target = $region8
  $region5: #{inverted_residual_forward.1} parent=0 // loop_body
    %s21 = ssub.s32 %s16, 1
    %s22 = ssub.s32 %s16, 2
    %s29 = sadd.s32 1, %s24
    %p30 = scmp.ge.s32.totalorder %s29, 2
    %s31 = scalar_select %p30, 0, %s29
    %s32 = sadd.s32 1, %s23
    %s33 = scalar_select %p30, %s32, %s23
    %p34 = scmp.ge.s32.totalorder %s33, 2
    %s35 = scalar_select %p34, 0, %s33
    %s36 = ssub.s32 %s23, %s35
    %p37 = scmp.eq.s32.totalorder %s36, 0
    %s39 = sadd.s32 %s38, 1
    %s40 = scalar_select %p37, %s38, %s39
    %p43 = pneg %p37
    %p44 = scmp.eq.s32.totalorder %s16, 3
    %p45 = por %p43, %p44
    %p46 = scmp.ne.s32.totalorder %s38, %s41
    %p47 = scmp.eq.s32.totalorder %s16, 0
    %p48 = por %p46, %p47
    %p49 = scmp.ne.s32.totalorder %s38, %s41
    %p50 = scmp.eq.s32.totalorder %s21, 3
    %p51 = por %p49, %p50
    %p52 = scmp.ne.s32.totalorder %s41, %s42
    %p53 = scmp.eq.s32.totalorder %s21, 0
    %p54 = por %p52, %p53
    %p55 = scmp.ne.s32.totalorder %s41, %s42
    %p56 = scmp.eq.s32.totalorder %s22, 3
    %p57 = por %p55, %p56
    %p59 = scmp.ne.s32.totalorder %s42, %s58
    %p60 = scmp.eq.s32.totalorder %s22, 0
    %p61 = por %p59, %p60
    %s63 = sadd.s32 %s62, 1
    %p66 = scmp.eq.s32.totalorder %s16, 3
    %p67 = scmp.ne.s32.totalorder %s62, %s64
    %p68 = scmp.eq.s32.totalorder %s16, 0
    %p69 = por %p67, %p68
    %p70 = scmp.ne.s32.totalorder %s62, %s64
    %p71 = scmp.eq.s32.totalorder %s21, 3
    %p72 = por %p70, %p71
    %p73 = scmp.ne.s32.totalorder %s64, %s65
    %p74 = scmp.eq.s32.totalorder %s21, 0
    %p75 = por %p73, %p74
    %p76 = scmp.ne.s32.totalorder %s64, %s65
    %p77 = scmp.eq.s32.totalorder %s22, 3
    %p78 = por %p76, %p77
    %p80 = scmp.ne.s32.totalorder %s65, %s79
    %p81 = scmp.eq.s32.totalorder %s22, 0
    %p82 = por %p80, %p81
    %s84 = sadd.s32 %s83, 1
    %p87 = scmp.eq.s32.totalorder %s16, 3
    %p88 = scmp.ne.s32.totalorder %s83, %s85
    %p89 = scmp.eq.s32.totalorder %s16, 0
    %p90 = por %p88, %p89
    %p91 = scmp.ne.s32.totalorder %s83, %s85
    %p92 = scmp.eq.s32.totalorder %s21, 3
    %p93 = por %p91, %p92
    %p94 = scmp.ne.s32.totalorder %s85, %s86
    %p95 = scmp.eq.s32.totalorder %s21, 0
    %p96 = por %p94, %p95
    %p97 = scmp.ne.s32.totalorder %s85, %s86
    %p98 = scmp.eq.s32.totalorder %s22, 3
    %p99 = por %p97, %p98
    %p101 = scmp.ne.s32.totalorder %s86, %s100
    %p102 = scmp.eq.s32.totalorder %s22, 0
    %p103 = por %p101, %p102
    %s105 = sadd.s32 %s104, 1
    %p108 = scmp.eq.s32.totalorder %s16, 3
    %p109 = scmp.ne.s32.totalorder %s104, %s106
    %p110 = scmp.eq.s32.totalorder %s16, 0
    %p111 = por %p109, %p110
    %p112 = scmp.ne.s32.totalorder %s104, %s106
    %p113 = scmp.eq.s32.totalorder %s21, 3
    %p114 = por %p112, %p113
    %p115 = scmp.ne.s32.totalorder %s106, %s107
    %p116 = scmp.eq.s32.totalorder %s21, 0
    %p117 = por %p115, %p116
    %p118 = scmp.ne.s32.totalorder %s106, %s107
    %p119 = scmp.eq.s32.totalorder %s22, 3
    %p120 = por %p118, %p119
    %p122 = scmp.ne.s32.totalorder %s107, %s121
    %p123 = scmp.eq.s32.totalorder %s22, 0
    %p124 = por %p122, %p123
    %s126 = sadd.s32 %s125, 1
    %p129 = scmp.eq.s32.totalorder %s16, 3
    %p130 = scmp.ne.s32.totalorder %s125, %s127
    %p131 = scmp.eq.s32.totalorder %s16, 0
    %p132 = por %p130, %p131
    %p133 = scmp.ne.s32.totalorder %s125, %s127
    %p134 = scmp.eq.s32.totalorder %s21, 3
    %p135 = por %p133, %p134
    %p136 = scmp.ne.s32.totalorder %s127, %s128
    %p137 = scmp.eq.s32.totalorder %s21, 0
    %p138 = por %p136, %p137
    %p139 = scmp.ne.s32.totalorder %s127, %s128
    %p140 = scmp.eq.s32.totalorder %s22, 3
    %p141 = por %p139, %p140
    %p143 = scmp.ne.s32.totalorder %s128, %s142
    %p144 = scmp.eq.s32.totalorder %s22, 0
    %p145 = por %p143, %p144
    %s147 = sadd.s32 %s146, 1
    %p150 = scmp.eq.s32.totalorder %s16, 3
    %p151 = scmp.ne.s32.totalorder %s146, %s148
    %p152 = scmp.eq.s32.totalorder %s16, 0
    %p153 = por %p151, %p152
    %p154 = scmp.ne.s32.totalorder %s146, %s148
    %p155 = scmp.eq.s32.totalorder %s21, 3
    %p156 = por %p154, %p155
    %p157 = scmp.ne.s32.totalorder %s148, %s149
    %p158 = scmp.eq.s32.totalorder %s21, 0
    %p159 = por %p157, %p158
    %p160 = scmp.ne.s32.totalorder %s148, %s149
    %p161 = scmp.eq.s32.totalorder %s22, 3
    %p162 = por %p160, %p161
    %p164 = scmp.ne.s32.totalorder %s149, %s163
    %p165 = scmp.eq.s32.totalorder %s22, 0
    %p166 = por %p164, %p165
    %s168 = sadd.s32 %s167, 1
    %p171 = scmp.eq.s32.totalorder %s16, 3
    %p172 = scmp.ne.s32.totalorder %s167, %s169
    %p173 = scmp.eq.s32.totalorder %s16, 0
    %p174 = por %p172, %p173
    %p175 = scmp.ne.s32.totalorder %s167, %s169
    %p176 = scmp.eq.s32.totalorder %s21, 3
    %p177 = por %p175, %p176
    %p178 = scmp.ne.s32.totalorder %s169, %s170
    %p179 = scmp.eq.s32.totalorder %s21, 0
    %p180 = por %p178, %p179
    %p181 = scmp.ne.s32.totalorder %s169, %s170
    %p182 = scmp.eq.s32.totalorder %s22, 3
    %p183 = por %p181, %p182
    %p185 = scmp.ne.s32.totalorder %s170, %s184
    %p186 = scmp.eq.s32.totalorder %s22, 0
    %p187 = por %p185, %p186
    %s189 = sadd.s32 %s188, 1
    %p192 = scmp.eq.s32.totalorder %s16, 3
    %p193 = scmp.ne.s32.totalorder %s188, %s190
    %p194 = scmp.eq.s32.totalorder %s16, 0
    %p195 = por %p193, %p194
    %p196 = scmp.ne.s32.totalorder %s188, %s190
    %p197 = scmp.eq.s32.totalorder %s21, 3
    %p198 = por %p196, %p197
    %p199 = scmp.ne.s32.totalorder %s190, %s191
    %p200 = scmp.eq.s32.totalorder %s21, 0
    %p201 = por %p199, %p200
    %p202 = scmp.ne.s32.totalorder %s190, %s191
    %p203 = scmp.eq.s32.totalorder %s22, 3
    %p204 = por %p202, %p203
    %p206 = scmp.ne.s32.totalorder %s191, %s205
    %p207 = scmp.eq.s32.totalorder %s22, 0
    %p208 = por %p206, %p207
    %s210 = sadd.s32 %s209, 1
    %p213 = scmp.eq.s32.totalorder %s16, 3
    %p214 = scmp.ne.s32.totalorder %s209, %s211
    %p215 = scmp.eq.s32.totalorder %s16, 0
    %p216 = por %p214, %p215
    %p217 = scmp.ne.s32.totalorder %s209, %s211
    %p218 = scmp.eq.s32.totalorder %s21, 3
    %p219 = por %p217, %p218
    %p220 = scmp.ne.s32.totalorder %s211, %s212
    %p221 = scmp.eq.s32.totalorder %s21, 0
    %p222 = por %p220, %p221
    %p223 = scmp.ne.s32.totalorder %s211, %s212
    %p224 = scmp.eq.s32.totalorder %s22, 3
    %p225 = por %p223, %p224
    %p227 = scmp.ne.s32.totalorder %s212, %s226
    %p228 = scmp.eq.s32.totalorder %s22, 0
    %p229 = por %p227, %p228
    %s231 = sadd.s32 %s230, 1
    %p234 = scmp.eq.s32.totalorder %s16, 3
    %p235 = scmp.ne.s32.totalorder %s230, %s232
    %p236 = scmp.eq.s32.totalorder %s16, 0
    %p237 = por %p235, %p236
    %p238 = scmp.ne.s32.totalorder %s230, %s232
    %p239 = scmp.eq.s32.totalorder %s21, 3
    %p240 = por %p238, %p239
    %p241 = scmp.ne.s32.totalorder %s232, %s233
    %p242 = scmp.eq.s32.totalorder %s21, 0
    %p243 = por %p241, %p242
    %p244 = scmp.ne.s32.totalorder %s232, %s233
    %p245 = scmp.eq.s32.totalorder %s22, 3
    %p246 = por %p244, %p245
    %p248 = scmp.ne.s32.totalorder %s233, %s247
    %p249 = scmp.eq.s32.totalorder %s22, 0
    %p250 = por %p248, %p249
    %s251 = ssub.s32 %s23, %s35
    %s252 = ssub.s32 %s24, %s31
    %s253 = sor.u32 %s251, %s252
    %p254 = scmp.eq.s32.totalorder %s253, 0
    %s256 = sadd.s32 %s255, 1
    %s257 = scalar_select %p254, %s255, %s256
    %p260 = pneg %p254
    %p261 = scmp.eq.s32.totalorder %s16, 3
    %p262 = por %p260, %p261
    %p263 = scmp.ne.s32.totalorder %s255, %s258
    %p264 = scmp.eq.s32.totalorder %s16, 0
    %p265 = por %p263, %p264
    %p266 = scmp.ne.s32.totalorder %s255, %s258
    %p267 = scmp.eq.s32.totalorder %s21, 3
    %p268 = por %p266, %p267
    %p269 = scmp.ne.s32.totalorder %s258, %s259
    %p270 = scmp.eq.s32.totalorder %s21, 0
    %p271 = por %p269, %p270
    %p272 = scmp.ne.s32.totalorder %s258, %s259
    %p273 = scmp.eq.s32.totalorder %s22, 3
    %p274 = por %p272, %p273
    %p276 = scmp.ne.s32.totalorder %s259, %s275
    %p277 = scmp.eq.s32.totalorder %s22, 0
    %p278 = por %p276, %p277
    %p279 = scmp.le.s32.totalorder 1, %s16
    %p280 = scmp.lt.s32.totalorder %s16, 5
    %p281 = pnand %p279, %p280
    %p282 = pneg %p281
    // Predicated region
    $region9: #{inverted_residual_forward.1} parent=5 // pred_check
      _
    $region10: #{inverted_residual_forward.1} parent=5 // pred_check_branch
      %284 = sbr.rel (%p281) target = $region12
    $region11: #{inverted_residual_forward.1} parent=5 // pred_region
      %s285 = ssub.s32 %s16, 1
      // Predicated region
      $region13: #{inverted_residual_forward.1} parent=11 // pred_check
        %p286 = pneg %p75
      $region14: #{inverted_residual_forward.1} parent=11 // pred_check_branch
        %288 = sbr.rel (%p286) target = $region16
      $region15: #{inverted_residual_forward.1} parent=11 // pred_region
        _
      $region16: #{inverted_residual_forward.1} parent=11 // pred_fallthru
        _
      // Predicated region
      $region17: #{inverted_residual_forward.1} parent=11 // pred_check
        %p289 = pneg %p96
      $region18: #{inverted_residual_forward.1} parent=11 // pred_check_branch
        %291 = sbr.rel (%p289) target = $region20
      $region19: #{inverted_residual_forward.1} parent=11 // pred_region
        _
      $region20: #{inverted_residual_forward.1} parent=11 // pred_fallthru
        _
      // Predicated region
      $region21: #{inverted_residual_forward.1} parent=11 // pred_check
        %p292 = pneg %p117
      $region22: #{inverted_residual_forward.1} parent=11 // pred_check_branch
        %294 = sbr.rel (%p292) target = $region24
      $region23: #{inverted_residual_forward.1} parent=11 // pred_region
        _
      $region24: #{inverted_residual_forward.1} parent=11 // pred_fallthru
        _
      // Predicated region
      $region25: #{inverted_residual_forward.1} parent=11 // pred_check
        %p295 = pneg %p138
      $region26: #{inverted_residual_forward.1} parent=11 // pred_check_branch
        %297 = sbr.rel (%p295) target = $region28
      $region27: #{inverted_residual_forward.1} parent=11 // pred_region
        _
      $region28: #{inverted_residual_forward.1} parent=11 // pred_fallthru
        _
      // Predicated region
      $region29: #{inverted_residual_forward.1} parent=11 // pred_check
        %p298 = pneg %p159
      $region30: #{inverted_residual_forward.1} parent=11 // pred_check_branch
        %300 = sbr.rel (%p298) target = $region32
      $region31: #{inverted_residual_forward.1} parent=11 // pred_region
        _
      $region32: #{inverted_residual_forward.1} parent=11 // pred_fallthru
        _
      // Predicated region
      $region33: #{inverted_residual_forward.1} parent=11 // pred_check
        %p301 = pneg %p180
      $region34: #{inverted_residual_forward.1} parent=11 // pred_check_branch
        %303 = sbr.rel (%p301) target = $region36
      $region35: #{inverted_residual_forward.1} parent=11 // pred_region
        _
      $region36: #{inverted_residual_forward.1} parent=11 // pred_fallthru
        _
      // Predicated region
      $region37: #{inverted_residual_forward.1} parent=11 // pred_check
        %p304 = pneg %p201
      $region38: #{inverted_residual_forward.1} parent=11 // pred_check_branch
        %306 = sbr.rel (%p304) target = $region40
      $region39: #{inverted_residual_forward.1} parent=11 // pred_region
        _
      $region40: #{inverted_residual_forward.1} parent=11 // pred_fallthru
        _
      // Predicated region
      $region41: #{inverted_residual_forward.1} parent=11 // pred_check
        %p307 = pneg %p222
      $region42: #{inverted_residual_forward.1} parent=11 // pred_check_branch
        %309 = sbr.rel (%p307) target = $region44
      $region43: #{inverted_residual_forward.1} parent=11 // pred_region
        _
      $region44: #{inverted_residual_forward.1} parent=11 // pred_fallthru
        _
      // Predicated region
      $region45: #{inverted_residual_forward.1} parent=11 // pred_check
        %p310 = pneg %p243
      $region46: #{inverted_residual_forward.1} parent=11 // pred_check_branch
        %312 = sbr.rel (%p310) target = $region48
      $region47: #{inverted_residual_forward.1} parent=11 // pred_region
        _
      $region48: #{inverted_residual_forward.1} parent=11 // pred_fallthru
        _
    $region12: #{inverted_residual_forward.1} parent=5 // pred_fallthru
      _
    %p313 = scmp.lt.s32.totalorder %s16, 4
    // Predicated region
    $region49: #{inverted_residual_forward.1} parent=5 // pred_check
      %p314 = pneg %p313
    $region50: #{inverted_residual_forward.1} parent=5 // pred_check_branch
      %316 = sbr.rel (%p314) target = $region52
    $region51: #{inverted_residual_forward.1} parent=5 // pred_region
      // Predicated region
      $region53: #{inverted_residual_forward.1} parent=51 // pred_check
        %p317 = pneg %p48
      $region54: #{inverted_residual_forward.1} parent=51 // pred_check_branch
        %319 = sbr.rel (%p317) target = $region56
      $region55: #{inverted_residual_forward.1} parent=51 // pred_region
        %p320 = scmp.lt.s32.totalorder %s23, 1
        %s321 = scalar_select %p320, %s23, 1
        %s322 = smul.addr %s321, 54
        %s323 = smul.addr %s322, 8
        %s324 = scalar_lea.vmem %s0, %s323
      $region56: #{inverted_residual_forward.1} parent=51 // pred_fallthru
        _
    $region52: #{inverted_residual_forward.1} parent=5 // pred_fallthru
      _
    %p325 = scmp.le.s32.totalorder 1, %s16
    %p326 = scmp.lt.s32.totalorder %s16, 5
    %p327 = pnand %p325, %p326
    %p328 = pneg %p327
    // Predicated region
    $region57: #{inverted_residual_forward.1} parent=5 // pred_check
      _
    $region58: #{inverted_residual_forward.1} parent=5 // pred_check_branch
      %330 = sbr.rel (%p327) target = $region60
    $region59: #{inverted_residual_forward.1} parent=5 // pred_region
      %s331 = ssub.s32 %s16, 1
      %p332 = scmp.lt.s32.totalorder %s25, 1
      %s333 = scalar_select %p332, %s25, 1
      %s334 = smul.addr %s333, 54
      %s335 = smul.addr %s334, 8
      %s336 = scalar_lea.vmem %s0, %s335
      %p337 = pneg %p54
      %p338 = pneg %p51
      %p339 = pneg %p75
      %p340 = pneg %p72
      %p341 = pneg %p96
      %p342 = pneg %p93
      %p343 = pneg %p117
      %p344 = pneg %p114
      %p345 = pneg %p138
      %p346 = pneg %p135
      %p347 = pneg %p159
      %p348 = pneg %p156
      %p349 = pneg %p180
      %p350 = pneg %p177
      %p351 = pneg %p201
      %p352 = pneg %p198
      %p353 = pneg %p222
      %p354 = pneg %p219
      %p355 = pneg %p243
      %p356 = pneg %p240
      %p357 = pneg %p271
      %p358 = pneg %p268
      %s359 = smul.u32 8, %s26
      %p360 = scmp.lt.s32.totalorder %s25, 1
      %s361 = scalar_select %p360, %s25, 1
      %p362 = scmp.lt.s32.totalorder %s359, 15
      %s363 = scalar_select %p362, %s359, 15
      %s364 = smul.addr %s363, 2
      %s365 = smul.addr %s361, 32
      %s366 = sadd.s32 %s364, %s365
      %s367 = smul.addr %s366, 8
      %s368 = scalar_lea.vmem %s10, %s367
      %p369 = scmp.lt.s32.totalorder %s25, 1
      %s370 = scalar_select %p369, %s25, 1
      %s371 = smul.addr %s370, 54
      %s372 = smul.addr %s371, 8
      %s373 = scalar_lea.vmem %s0, %s372
      %s374 = smul.u32 8, %s26
      %p375 = scmp.lt.s32.totalorder %s25, 1
      %s376 = scalar_select %p375, %s25, 1
      %p377 = scmp.lt.s32.totalorder %s374, 15
      %s378 = scalar_select %p377, %s374, 15
      %s379 = smul.addr %s378, 2
      %s380 = smul.addr %s376, 32
      %s381 = sadd.s32 %s379, %s380
      %s382 = smul.addr %s381, 8
      %s383 = scalar_lea.vmem %s10, %s382
      %s384 = smul.u32 8, %s26
      %s386 = smul.u32 %s26, 8
      %s387 = smul.u32 %s386, 24
      %s388 = scalar_lea.vmem %s373, %s387
      %v389 = vld [vmem:[%s388] sm:$0xff]
      %v390 = vld [vmem:[%s388 + $0x8] sm:$0xff]
      %v391 = vld [vmem:[%s388 + $0x10] sm:$0xff]
      %v392 = vld [vmem:[%s388 + $0x18] sm:$0xff]
      %v393 = vld [vmem:[%s388 + $0x20] sm:$0xff]
      %v394 = vld [vmem:[%s388 + $0x28] sm:$0xff]
      %v395 = vld [vmem:[%s388 + $0x30] sm:$0xff]
      %v396 = vld [vmem:[%s388 + $0x38] sm:$0xff]
      %v397 = vld [vmem:[%s388 + $0x40] sm:$0xff]
      %v398 = vld [vmem:[%s388 + $0x48] sm:$0xff]
      %v399 = vld [vmem:[%s388 + $0x50] sm:$0xff]
      %v400 = vld [vmem:[%s388 + $0x58] sm:$0xff]
      %v401 = vld [vmem:[%s388 + $0x60] sm:$0xff]
      %v402 = vld [vmem:[%s388 + $0x68] sm:$0xff]
      %v403 = vld [vmem:[%s388 + $0x70] sm:$0xff]
      %v404 = vld [vmem:[%s388 + $0x78] sm:$0xff]
      %v405 = vld [vmem:[%s388 + $0x80] sm:$0xff]
      %v406 = vld [vmem:[%s388 + $0x88] sm:$0xff]
      %v407 = vld [vmem:[%s388 + $0x90] sm:$0xff]
      %v408 = vld [vmem:[%s388 + $0x98] sm:$0xff]
      %v409 = vld [vmem:[%s388 + $0xa0] sm:$0xff]
      %v410 = vld [vmem:[%s388 + $0xa8] sm:$0xff]
      %v411 = vld [vmem:[%s388 + $0xb0] sm:$0xff]
      %v412 = vld [vmem:[%s388 + $0xb8] sm:$0xff]
      %v413 = vld [vmem:[%s388 + $0xc0] sm:$0xff]
      %v414 = vld [vmem:[%s388 + $0xc8] sm:$0xff]
      %v415 = vld [vmem:[%s388 + $0xd0] sm:$0xff]
      %v416 = vld [vmem:[%s388 + $0xd8] sm:$0xff]
      %v417 = vld [vmem:[%s388 + $0xe0] sm:$0xff]
      %v418 = vld [vmem:[%s388 + $0xe8] sm:$0xff]
      %v419 = vpack.c.bf16 %v390, %v389
      %v420 = vpack.c.bf16 %v392, %v391
      %v421 = vpack.c.bf16 %v394, %v393
      %v422 = vpack.c.bf16 %v396, %v395
      %v423 = vpack.c.bf16 %v398, %v397
      %v424 = vpack.c.bf16 %v400, %v399
      %v425 = vpack.c.bf16 %v402, %v401
      %v426 = vpack.c.bf16 %v404, %v403
      %v427 = vpack.c.bf16 %v406, %v405
      %v428 = vpack.c.bf16 %v408, %v407
      %v429 = vpack.c.bf16 %v410, %v409
      %v430 = vpack.c.bf16 %v412, %v411
      %v431 = vpack.c.bf16 %v414, %v413
      %v432 = vpack.c.bf16 %v416, %v415
      %v433 = vpack.c.bf16 %v418, %v417
      %v434 = vld [vmem:[%s1] sm:$0x3]
      %vm435 = vcmask 31744
      %v437 = vsel %vm435, %v419, 0
      %v440 = vsel %vm435, %v420, 0
      %v443 = vsel %vm435, %v421, 0
      %v446 = vsel %vm435, %v422, 0
      %v449 = vsel %vm435, %v423, 0
      %v452 = vsel %vm435, %v424, 0
      %v455 = vsel %vm435, %v425, 0
      %v458 = vsel %vm435, %v426, 0
      %v461 = vsel %vm435, %v427, 0
      %v464 = vsel %vm435, %v428, 0
      %v467 = vsel %vm435, %v429, 0
      %v470 = vsel %vm435, %v430, 0
      %v473 = vsel %vm435, %v431, 0
      %v476 = vsel %vm435, %v432, 0
      %v479 = vsel %vm435, %v433, 0
      %vm481 = vcmask 1041408
      %v483 = vsel %vm481, %v434, 0
      %485 = vmatprep.subr.bf16.mxu0 0
      %486 = vmatpush1.bf16.msra.mxu0 0
      %487 = vmatprep.subr.bf16.mxu0 0
      %488 = vmatpush1.bf16.msra.mxu0 0
      %489 = vmatprep.subr.bf16.mxu0 0
      %490 = vmatpush1.bf16.msra.mxu0 0
      %491 = vmatprep.subr.bf16.mxu0 0
      %492 = vmatpush1.bf16.msra.mxu0 0
      %493 = vmatprep.subr.bf16.mxu0 0
      %494 = vmatpush1.bf16.msra.mxu0 0
      %495 = vmatprep.subr.bf16.mxu0 0
      %496 = vmatpush1.bf16.msra.mxu0 0
      %497 = vmatprep.subr.bf16.mxu0 0
      %498 = vmatpush1.bf16.msra.mxu0 0
      %499 = vmatprep.subr.bf16.mxu0 0
      %500 = vmatpush1.bf16.msra.mxu0 %v483
      %501 = vmatprep.subr.bf16.mxu0 0
      %502 = vmatpush2.bf16.msra.mxu0 0
      %503 = vmatprep.subr.bf16.mxu0 0
      %504 = vmatpush2.bf16.msra.mxu0 0
      %505 = vmatprep.subr.bf16.mxu0 0
      %506 = vmatpush2.bf16.msra.mxu0 0
      %507 = vmatprep.subr.bf16.mxu0 0
      %508 = vmatpush2.bf16.msra.mxu0 0
      %509 = vmatprep.subr.bf16.mxu0 0
      %510 = vmatpush2.bf16.msra.mxu0 0
      %511 = vmatprep.subr.bf16.mxu0 0
      %512 = vmatpush2.bf16.msra.mxu0 0
      %513 = vmatprep.subr.bf16.mxu0 0
      %514 = vmatpush2.bf16.msra.mxu0 0
      %515 = vmatprep.subr.bf16.mxu0 0
      %516 = vmatpush2.bf16.msra.mxu0 0
      %517 = vmatprep.mubr.bf16.mxu0 0
      %518 = vmatmul.mubr.bf16.gmra.mxu0 %v437
      %v519 = vpop.f32.mrf.mxu0
      %v520 = vadd.f32 0.0, %v519
      %v521 = vpop.f32.mrf.mxu0
      %v522 = vpop.f32.mrf.mxu0
      %v523 = vadd.f32 0.0, %v522
      %v524 = vpop.f32.mrf.mxu0
      %525 = vmatprep.mubr.bf16.mxu0 0
      %526 = vmatmul.mubr.bf16.gmra.mxu0 %v440
      %v527 = vpop.f32.mrf.mxu0
      %v528 = vadd.f32 0.0, %v527
      %v529 = vpop.f32.mrf.mxu0
      %v530 = vpop.f32.mrf.mxu0
      %v531 = vadd.f32 0.0, %v530
      %v532 = vpop.f32.mrf.mxu0
      %533 = vmatprep.mubr.bf16.mxu0 0
      %534 = vmatmul.mubr.bf16.gmra.mxu0 %v443
      %v535 = vpop.f32.mrf.mxu0
      %v536 = vadd.f32 0.0, %v535
      %v537 = vpop.f32.mrf.mxu0
      %v538 = vpop.f32.mrf.mxu0
      %v539 = vadd.f32 0.0, %v538
      %v540 = vpop.f32.mrf.mxu0
      %541 = vmatprep.mubr.bf16.mxu0 0
      %542 = vmatmul.mubr.bf16.gmra.mxu0 %v446
      %v543 = vpop.f32.mrf.mxu0
      %v544 = vadd.f32 0.0, %v543
      %v545 = vpop.f32.mrf.mxu0
      %v546 = vpop.f32.mrf.mxu0
      %v547 = vadd.f32 0.0, %v546
      %v548 = vpop.f32.mrf.mxu0
      %549 = vmatprep.mubr.bf16.mxu0 0
      %550 = vmatmul.mubr.bf16.gmra.mxu0 %v449
      %v551 = vpop.f32.mrf.mxu0
      %v552 = vadd.f32 0.0, %v551
      %v553 = vpop.f32.mrf.mxu0
      %v554 = vpop.f32.mrf.mxu0
      %v555 = vadd.f32 0.0, %v554
      %v556 = vpop.f32.mrf.mxu0
      %557 = vmatprep.mubr.bf16.mxu0 0
      %558 = vmatmul.mubr.bf16.gmra.mxu0 %v452
      %v559 = vpop.f32.mrf.mxu0
      %v560 = vadd.f32 0.0, %v559
      %v561 = vpop.f32.mrf.mxu0
      %v562 = vpop.f32.mrf.mxu0
      %v563 = vadd.f32 0.0, %v562
      %v564 = vpop.f32.mrf.mxu0
      %565 = vmatprep.mubr.bf16.mxu0 0
      %566 = vmatmul.mubr.bf16.gmra.mxu0 %v455
      %v567 = vpop.f32.mrf.mxu0
      %v568 = vadd.f32 0.0, %v567
      %v569 = vpop.f32.mrf.mxu0
      %v570 = vpop.f32.mrf.mxu0
      %v571 = vadd.f32 0.0, %v570
      %v572 = vpop.f32.mrf.mxu0
      %573 = vmatprep.mubr.bf16.mxu0 0
      %574 = vmatmul.mubr.bf16.gmra.mxu0 %v458
      %v575 = vpop.f32.mrf.mxu0
      %v576 = vadd.f32 0.0, %v575
      %v577 = vpop.f32.mrf.mxu0
      %v578 = vpop.f32.mrf.mxu0
      %v579 = vadd.f32 0.0, %v578
      %v580 = vpop.f32.mrf.mxu0
      %581 = vmatprep.mubr.bf16.mxu0 0
      %582 = vmatmul.mubr.bf16.gmra.mxu0 %v461
      %v583 = vpop.f32.mrf.mxu0
      %v584 = vadd.f32 0.0, %v583
      %v585 = vpop.f32.mrf.mxu0
      %v586 = vpop.f32.mrf.mxu0
      %v587 = vadd.f32 0.0, %v586
      %v588 = vpop.f32.mrf.mxu0
      %589 = vmatprep.mubr.bf16.mxu0 0
      %590 = vmatmul.mubr.bf16.gmra.mxu0 %v464
      %v591 = vpop.f32.mrf.mxu0
      %v592 = vadd.f32 0.0, %v591
      %v593 = vpop.f32.mrf.mxu0
      %v594 = vpop.f32.mrf.mxu0
      %v595 = vadd.f32 0.0, %v594
      %v596 = vpop.f32.mrf.mxu0
      %597 = vmatprep.mubr.bf16.mxu0 0
      %598 = vmatmul.mubr.bf16.gmra.mxu0 %v467
      %v599 = vpop.f32.mrf.mxu0
      %v600 = vadd.f32 0.0, %v599
      %v601 = vpop.f32.mrf.mxu0
      %v602 = vpop.f32.mrf.mxu0
      %v603 = vadd.f32 0.0, %v602
      %v604 = vpop.f32.mrf.mxu0
      %605 = vmatprep.mubr.bf16.mxu0 0
      %606 = vmatmul.mubr.bf16.gmra.mxu0 %v470
      %v607 = vpop.f32.mrf.mxu0
      %v608 = vadd.f32 0.0, %v607
      %v609 = vpop.f32.mrf.mxu0
      %v610 = vpop.f32.mrf.mxu0
      %v611 = vadd.f32 0.0, %v610
      %v612 = vpop.f32.mrf.mxu0
      %613 = vmatprep.mubr.bf16.mxu0 0
      %614 = vmatmul.mubr.bf16.gmra.mxu0 %v473
      %v615 = vpop.f32.mrf.mxu0
      %v616 = vadd.f32 0.0, %v615
      %v617 = vpop.f32.mrf.mxu0
      %v618 = vpop.f32.mrf.mxu0
      %v619 = vadd.f32 0.0, %v618
      %v620 = vpop.f32.mrf.mxu0
      %621 = vmatprep.mubr.bf16.mxu0 0
      %622 = vmatmul.mubr.bf16.gmra.mxu0 %v476
      %v623 = vpop.f32.mrf.mxu0
      %v624 = vadd.f32 0.0, %v623
      %v625 = vpop.f32.mrf.mxu0
      %v626 = vpop.f32.mrf.mxu0
      %v627 = vadd.f32 0.0, %v626
      %v628 = vpop.f32.mrf.mxu0
      %629 = vmatprep.mubr.bf16.mxu0 0
      %630 = vmatmul.mubr.bf16.gmra.mxu0 %v479
      %v631 = vpop.f32.mrf.mxu0
      %v632 = vadd.f32 0.0, %v631
      %v633 = vpop.f32.mrf.mxu0
      %v634 = vpop.f32.mrf.mxu0
      %v635 = vadd.f32 0.0, %v634
      %v636 = vpop.f32.mrf.mxu0
      %637 = vdwg.mxu0
      %v638 = vld [vmem:[%s2] sm:$0x1]
      %v640 = vlaneseq
      %v641 = vshrl.u32 %v640, 7
      %v642 = vsub.s32 0, %v641
      %v643 = vrot.slane %v638, %v642
      %v645 = vmul.f32 %v520, %v643
      %v646 = vmul.f32 %v523, %v643
      %v647 = vmul.f32 %v528, %v643
      %v648 = vmul.f32 %v531, %v643
      %v649 = vmul.f32 %v536, %v643
      %v650 = vmul.f32 %v539, %v643
      %v651 = vmul.f32 %v544, %v643
      %v652 = vmul.f32 %v547, %v643
      %v653 = vmul.f32 %v552, %v643
      %v654 = vmul.f32 %v555, %v643
      %v655 = vmul.f32 %v560, %v643
      %v656 = vmul.f32 %v563, %v643
      %v657 = vmul.f32 %v568, %v643
      %v658 = vmul.f32 %v571, %v643
      %v659 = vmul.f32 %v576, %v643
      %v660 = vmul.f32 %v579, %v643
      %v661 = vmul.f32 %v584, %v643
      %v662 = vmul.f32 %v587, %v643
      %v663 = vmul.f32 %v592, %v643
      %v664 = vmul.f32 %v595, %v643
      %v665 = vmul.f32 %v600, %v643
      %v666 = vmul.f32 %v603, %v643
      %v667 = vmul.f32 %v608, %v643
      %v668 = vmul.f32 %v611, %v643
      %v669 = vmul.f32 %v616, %v643
      %v670 = vmul.f32 %v619, %v643
      %v671 = vmul.f32 %v624, %v643
      %v672 = vmul.f32 %v627, %v643
      %v673 = vmul.f32 %v632, %v643
      %v674 = vmul.f32 %v635, %v643
      %v675 = vld [vmem:[%s3] sm:$0x1]
      %v677 = vlaneseq
      %v678 = vshrl.u32 %v677, 7
      %v679 = vsub.s32 0, %v678
      %v680 = vrot.slane %v675, %v679
      %v682 = vadd.f32 %v645, %v680
      %v683 = vadd.f32 %v646, %v680
      %v684 = vadd.f32 %v647, %v680
      %v685 = vadd.f32 %v648, %v680
      %v686 = vadd.f32 %v649, %v680
      %v687 = vadd.f32 %v650, %v680
      %v688 = vadd.f32 %v651, %v680
      %v689 = vadd.f32 %v652, %v680
      %v690 = vadd.f32 %v653, %v680
      %v691 = vadd.f32 %v654, %v680
      %v692 = vadd.f32 %v655, %v680
      %v693 = vadd.f32 %v656, %v680
      %v694 = vadd.f32 %v657, %v680
      %v695 = vadd.f32 %v658, %v680
      %v696 = vadd.f32 %v659, %v680
      %v697 = vadd.f32 %v660, %v680
      %v698 = vadd.f32 %v661, %v680
      %v699 = vadd.f32 %v662, %v680
      %v700 = vadd.f32 %v663, %v680
      %v701 = vadd.f32 %v664, %v680
      %v702 = vadd.f32 %v665, %v680
      %v703 = vadd.f32 %v666, %v680
      %v704 = vadd.f32 %v667, %v680
      %v705 = vadd.f32 %v668, %v680
      %v706 = vadd.f32 %v669, %v680
      %v707 = vadd.f32 %v670, %v680
      %v708 = vadd.f32 %v671, %v680
      %v709 = vadd.f32 %v672, %v680
      %v710 = vadd.f32 %v673, %v680
      %v711 = vadd.f32 %v674, %v680
      %v712 = vmax.f32 %v682, 0.0
      %v713 = vmax.f32 %v683, 0.0
      %v714 = vmax.f32 %v684, 0.0
      %v715 = vmax.f32 %v685, 0.0
      %v716 = vmax.f32 %v686, 0.0
      %v717 = vmax.f32 %v687, 0.0
      %v718 = vmax.f32 %v688, 0.0
      %v719 = vmax.f32 %v689, 0.0
      %v720 = vmax.f32 %v690, 0.0
      %v721 = vmax.f32 %v691, 0.0
      %v722 = vmax.f32 %v692, 0.0
      %v723 = vmax.f32 %v693, 0.0
      %v724 = vmax.f32 %v694, 0.0
      %v725 = vmax.f32 %v695, 0.0
      %v726 = vmax.f32 %v696, 0.0
      %v727 = vmax.f32 %v697, 0.0
      %v728 = vmax.f32 %v698, 0.0
      %v729 = vmax.f32 %v699, 0.0
      %v730 = vmax.f32 %v700, 0.0
      %v731 = vmax.f32 %v701, 0.0
      %v732 = vmax.f32 %v702, 0.0
      %v733 = vmax.f32 %v703, 0.0
      %v734 = vmax.f32 %v704, 0.0
      %v735 = vmax.f32 %v705, 0.0
      %v736 = vmax.f32 %v706, 0.0
      %v737 = vmax.f32 %v707, 0.0
      %v738 = vmax.f32 %v708, 0.0
      %v739 = vmax.f32 %v709, 0.0
      %v740 = vmax.f32 %v710, 0.0
      %v741 = vmax.f32 %v711, 0.0
      %v742 = vstv %s386
      %v743 = vadd.s32 %v742, 1
      %v744 = vadd.s32 %v742, 2
      %v745 = vadd.s32 %v742, 3
      %v746 = vadd.s32 %v742, 4
      %v747 = vadd.s32 %v742, 5
      %v748 = vadd.s32 %v742, 6
      %v749 = vadd.s32 %v742, 7
      %v750 = vadd.s32 %v742, 8
      %v751 = vadd.s32 %v742, 9
      %v752 = vlaneseq
      %v753 = vshrl.u32 %v752, 7
      %v754 = vadd.s32 %v753, 8
      %v755 = vadd.s32 %v753, 16
      %vm756 = vcmp.ge.s32.totalorder %v742, 1
      %vm757 = vcmp.ge.s32.totalorder %v743, 1
      %vm758 = vcmp.ge.s32.totalorder %v744, 1
      %vm759 = vcmp.ge.s32.totalorder %v745, 1
      %vm760 = vcmp.ge.s32.totalorder %v746, 1
      %vm761 = vcmp.ge.s32.totalorder %v747, 1
      %vm762 = vcmp.ge.s32.totalorder %v748, 1
      %vm763 = vcmp.ge.s32.totalorder %v749, 1
      %vm764 = vcmp.ge.s32.totalorder %v750, 1
      %vm765 = vcmp.ge.s32.totalorder %v751, 1
      %vm766 = vcmp.lt.s32.totalorder %v742, 17
      %vm767 = vcmp.lt.s32.totalorder %v743, 17
      %vm768 = vcmp.lt.s32.totalorder %v744, 17
      %vm769 = vcmp.lt.s32.totalorder %v745, 17
      %vm770 = vcmp.lt.s32.totalorder %v746, 17
      %vm771 = vcmp.lt.s32.totalorder %v747, 17
      %vm772 = vcmp.lt.s32.totalorder %v748, 17
      %vm773 = vcmp.lt.s32.totalorder %v749, 17
      %vm774 = vcmp.lt.s32.totalorder %v750, 17
      %vm775 = vcmp.lt.s32.totalorder %v751, 17
      %vm776 = vmand %vm756, %vm766
      %vm777 = vmand %vm757, %vm767
      %vm778 = vmand %vm758, %vm768
      %vm779 = vmand %vm759, %vm769
      %vm780 = vmand %vm760, %vm770
      %vm781 = vmand %vm761, %vm771
      %vm782 = vmand %vm762, %vm772
      %vm783 = vmand %vm763, %vm773
      %vm784 = vmand %vm764, %vm774
      %vm785 = vmand %vm765, %vm775
      %vm786 = vcmp.ge.s32.totalorder %v753, 1
      %vm787 = vcmp.ge.s32.totalorder %v754, 1
      %vm788 = vcmp.ge.s32.totalorder %v755, 1
      %vm789 = vmand %vm776, %vm786
      %vm790 = vmand %vm776, %vm787
      %vm791 = vmand %vm776, %vm788
      %vm792 = vmand %vm777, %vm786
      %vm793 = vmand %vm777, %vm787
      %vm794 = vmand %vm777, %vm788
      %vm795 = vmand %vm778, %vm786
      %vm796 = vmand %vm778, %vm787
      %vm797 = vmand %vm778, %vm788
      %vm798 = vmand %vm779, %vm786
      %vm799 = vmand %vm779, %vm787
      %vm800 = vmand %vm779, %vm788
      %vm801 = vmand %vm780, %vm786
      %vm802 = vmand %vm780, %vm787
      %vm803 = vmand %vm780, %vm788
      %vm804 = vmand %vm781, %vm786
      %vm805 = vmand %vm781, %vm787
      %vm806 = vmand %vm781, %vm788
      %vm807 = vmand %vm782, %vm786
      %vm808 = vmand %vm782, %vm787
      %vm809 = vmand %vm782, %vm788
      %vm810 = vmand %vm783, %vm786
      %vm811 = vmand %vm783, %vm787
      %vm812 = vmand %vm783, %vm788
      %vm813 = vmand %vm784, %vm786
      %vm814 = vmand %vm784, %vm787
      %vm815 = vmand %vm784, %vm788
      %vm816 = vmand %vm785, %vm786
      %vm817 = vmand %vm785, %vm787
      %vm818 = vmand %vm785, %vm788
      %vm819 = vcmp.lt.s32.totalorder %v753, 17
      %vm820 = vcmp.lt.s32.totalorder %v754, 17
      %vm821 = vcmp.lt.s32.totalorder %v755, 17
      %vm822 = vmand %vm789, %vm819
      %vm823 = vmand %vm790, %vm820
      %vm824 = vmand %vm791, %vm821
      %vm825 = vmand %vm792, %vm819
      %vm826 = vmand %vm793, %vm820
      %vm827 = vmand %vm794, %vm821
      %vm828 = vmand %vm795, %vm819
      %vm829 = vmand %vm796, %vm820
      %vm830 = vmand %vm797, %vm821
      %vm831 = vmand %vm798, %vm819
      %vm832 = vmand %vm799, %vm820
      %vm833 = vmand %vm800, %vm821
      %vm834 = vmand %vm801, %vm819
      %vm835 = vmand %vm802, %vm820
      %vm836 = vmand %vm803, %vm821
      %vm837 = vmand %vm804, %vm819
      %vm838 = vmand %vm805, %vm820
      %vm839 = vmand %vm806, %vm821
      %vm840 = vmand %vm807, %vm819
      %vm841 = vmand %vm808, %vm820
      %vm842 = vmand %vm809, %vm821
      %vm843 = vmand %vm810, %vm819
      %vm844 = vmand %vm811, %vm820
      %vm845 = vmand %vm812, %vm821
      %vm846 = vmand %vm813, %vm819
      %vm847 = vmand %vm814, %vm820
      %vm848 = vmand %vm815, %vm821
      %vm849 = vmand %vm816, %vm819
      %vm850 = vmand %vm817, %vm820
      %vm851 = vmand %vm818, %vm821
      %v852 = vsel %vm822, 1, 0
      %v853 = vsel %vm823, 1, 0
      %v854 = vsel %vm824, 1, 0
      %v855 = vsel %vm825, 1, 0
      %v856 = vsel %vm826, 1, 0
      %v857 = vsel %vm827, 1, 0
      %v858 = vsel %vm828, 1, 0
      %v859 = vsel %vm829, 1, 0
      %v860 = vsel %vm830, 1, 0
      %v861 = vsel %vm831, 1, 0
      %v862 = vsel %vm832, 1, 0
      %v863 = vsel %vm833, 1, 0
      %v864 = vsel %vm834, 1, 0
      %v865 = vsel %vm835, 1, 0
      %v866 = vsel %vm836, 1, 0
      %v867 = vsel %vm837, 1, 0
      %v868 = vsel %vm838, 1, 0
      %v869 = vsel %vm839, 1, 0
      %v870 = vsel %vm840, 1, 0
      %v871 = vsel %vm841, 1, 0
      %v872 = vsel %vm842, 1, 0
      %v873 = vsel %vm843, 1, 0
      %v874 = vsel %vm844, 1, 0
      %v875 = vsel %vm845, 1, 0
      %v876 = vsel %vm846, 1, 0
      %v877 = vsel %vm847, 1, 0
      %v878 = vsel %vm848, 1, 0
      %v879 = vsel %vm849, 1, 0
      %v880 = vsel %vm850, 1, 0
      %v881 = vsel %vm851, 1, 0
      %vm882 = vcmp.eq.s32.totalorder %v852, 1
      %vm883 = vcmp.eq.s32.totalorder %v853, 1
      %vm884 = vcmp.eq.s32.totalorder %v854, 1
      %vm885 = vcmp.eq.s32.totalorder %v855, 1
      %vm886 = vcmp.eq.s32.totalorder %v856, 1
      %vm887 = vcmp.eq.s32.totalorder %v857, 1
      %vm888 = vcmp.eq.s32.totalorder %v858, 1
      %vm889 = vcmp.eq.s32.totalorder %v859, 1
      %vm890 = vcmp.eq.s32.totalorder %v860, 1
      %vm891 = vcmp.eq.s32.totalorder %v861, 1
      %vm892 = vcmp.eq.s32.totalorder %v862, 1
      %vm893 = vcmp.eq.s32.totalorder %v863, 1
      %vm894 = vcmp.eq.s32.totalorder %v864, 1
      %vm895 = vcmp.eq.s32.totalorder %v865, 1
      %vm896 = vcmp.eq.s32.totalorder %v866, 1
      %vm897 = vcmp.eq.s32.totalorder %v867, 1
      %vm898 = vcmp.eq.s32.totalorder %v868, 1
      %vm899 = vcmp.eq.s32.totalorder %v869, 1
      %vm900 = vcmp.eq.s32.totalorder %v870, 1
      %vm901 = vcmp.eq.s32.totalorder %v871, 1
      %vm902 = vcmp.eq.s32.totalorder %v872, 1
      %vm903 = vcmp.eq.s32.totalorder %v873, 1
      %vm904 = vcmp.eq.s32.totalorder %v874, 1
      %vm905 = vcmp.eq.s32.totalorder %v875, 1
      %vm906 = vcmp.eq.s32.totalorder %v876, 1
      %vm907 = vcmp.eq.s32.totalorder %v877, 1
      %vm908 = vcmp.eq.s32.totalorder %v878, 1
      %vm909 = vcmp.eq.s32.totalorder %v879, 1
      %vm910 = vcmp.eq.s32.totalorder %v880, 1
      %vm911 = vcmp.eq.s32.totalorder %v881, 1
      %v912 = vsel %vm882, %v712, 0.0
      %v913 = vsel %vm883, %v713, 0.0
      %v914 = vsel %vm884, %v714, 0.0
      %v915 = vsel %vm885, %v715, 0.0
      %v916 = vsel %vm886, %v716, 0.0
      %v917 = vsel %vm887, %v717, 0.0
      %v918 = vsel %vm888, %v718, 0.0
      %v919 = vsel %vm889, %v719, 0.0
      %v920 = vsel %vm890, %v720, 0.0
      %v921 = vsel %vm891, %v721, 0.0
      %v922 = vsel %vm892, %v722, 0.0
      %v923 = vsel %vm893, %v723, 0.0
      %v924 = vsel %vm894, %v724, 0.0
      %v925 = vsel %vm895, %v725, 0.0
      %v926 = vsel %vm896, %v726, 0.0
      %v927 = vsel %vm897, %v727, 0.0
      %v928 = vsel %vm898, %v728, 0.0
      %v929 = vsel %vm899, %v729, 0.0
      %v930 = vsel %vm900, %v730, 0.0
      %v931 = vsel %vm901, %v731, 0.0
      %v932 = vsel %vm902, %v732, 0.0
      %v933 = vsel %vm903, %v733, 0.0
      %v934 = vsel %vm904, %v734, 0.0
      %v935 = vsel %vm905, %v735, 0.0
      %v936 = vsel %vm906, %v736, 0.0
      %v937 = vsel %vm907, %v737, 0.0
      %v938 = vsel %vm908, %v738, 0.0
      %v939 = vsel %vm909, %v739, 0.0
      %v940 = vsel %vm910, %v740, 0.0
      %v941 = vsel %vm911, %v741, 0.0
      %v942 = vld [vmem:[%s4] sm:$0xff]
      %v943 = vld [vmem:[%s4 + $0x8] sm:$0x1]
      %v944 = vlaneseq
      %v945 = vshrl.u32 %v944, 7
      %v946 = vsub.s32 0, %v945
      %v947 = vrot.slane %v942, %v946
      %v948 = vmul.f32 %v912, %v947
      %v949 = vmul.f32 %v913, %v947
      %v950 = vmul.f32 %v915, %v947
      %v951 = vmul.f32 %v916, %v947
      %v952 = vmul.f32 %v918, %v947
      %v953 = vmul.f32 %v919, %v947
      %v954 = vmul.f32 %v921, %v947
      %v955 = vmul.f32 %v922, %v947
      %v956 = vmul.f32 %v924, %v947
      %v957 = vmul.f32 %v925, %v947
      %v958 = vmul.f32 %v927, %v947
      %v959 = vmul.f32 %v928, %v947
      %v960 = vmul.f32 %v930, %v947
      %v961 = vmul.f32 %v931, %v947
      %v962 = vmul.f32 %v933, %v947
      %v963 = vmul.f32 %v934, %v947
      %v964 = vlaneseq
      %v965 = vshrl.u32 %v964, 7
      %v966 = vsub.s32 1, %v965
      %v967 = vrot.slane %v942, %v966
      %v968 = vmul.f32 %v912, %v967
      %v969 = vmul.f32 %v913, %v967
      %v970 = vmul.f32 %v914, %v967
      %v971 = vmul.f32 %v915, %v967
      %v972 = vmul.f32 %v916, %v967
      %v973 = vmul.f32 %v917, %v967
      %v974 = vmul.f32 %v918, %v967
      %v975 = vmul.f32 %v919, %v967
      %v976 = vmul.f32 %v920, %v967
      %v977 = vmul.f32 %v921, %v967
      %v978 = vmul.f32 %v922, %v967
      %v979 = vmul.f32 %v923, %v967
      %v980 = vmul.f32 %v924, %v967
      %v981 = vmul.f32 %v925, %v967
      %v982 = vmul.f32 %v926, %v967
      %v983 = vmul.f32 %v927, %v967
      %v984 = vmul.f32 %v928, %v967
      %v985 = vmul.f32 %v929, %v967
      %v986 = vmul.f32 %v930, %v967
      %v987 = vmul.f32 %v931, %v967
      %v988 = vmul.f32 %v932, %v967
      %v989 = vmul.f32 %v933, %v967
      %v990 = vmul.f32 %v934, %v967
      %v991 = vmul.f32 %v935, %v967
      %vm1016 = vcmask 1046528
      %v1017 = vrot.slane %v968, 1
      %v1018 = vrot.slane %v969, 1
      %v1019 = vsel %vm1016, %v1017, %v1018
      %v1020 = vrot.slane %v970, 1
      %v1021 = vsel %vm1016, %v1018, %v1020
      %v1022 = vrot.slane %v971, 1
      %v1023 = vrot.slane %v972, 1
      %v1024 = vsel %vm1016, %v1022, %v1023
      %v1025 = vrot.slane %v973, 1
      %v1026 = vsel %vm1016, %v1023, %v1025
      %v1027 = vrot.slane %v974, 1
      %v1028 = vrot.slane %v975, 1
      %v1029 = vsel %vm1016, %v1027, %v1028
      %v1030 = vrot.slane %v976, 1
      %v1031 = vsel %vm1016, %v1028, %v1030
      %v1032 = vrot.slane %v977, 1
      %v1033 = vrot.slane %v978, 1
      %v1034 = vsel %vm1016, %v1032, %v1033
      %v1035 = vrot.slane %v979, 1
      %v1036 = vsel %vm1016, %v1033, %v1035
      %v1037 = vrot.slane %v980, 1
      %v1038 = vrot.slane %v981, 1
      %v1039 = vsel %vm1016, %v1037, %v1038
      %v1040 = vrot.slane %v982, 1
      %v1041 = vsel %vm1016, %v1038, %v1040
      %v1042 = vrot.slane %v983, 1
      %v1043 = vrot.slane %v984, 1
      %v1044 = vsel %vm1016, %v1042, %v1043
      %v1045 = vrot.slane %v985, 1
      %v1046 = vsel %vm1016, %v1043, %v1045
      %v1047 = vrot.slane %v986, 1
      %v1048 = vrot.slane %v987, 1
      %v1049 = vsel %vm1016, %v1047, %v1048
      %v1050 = vrot.slane %v988, 1
      %v1051 = vsel %vm1016, %v1048, %v1050
      %v1052 = vrot.slane %v989, 1
      %v1053 = vrot.slane %v990, 1
      %v1054 = vsel %vm1016, %v1052, %v1053
      %v1055 = vrot.slane %v991, 1
      %v1056 = vsel %vm1016, %v1053, %v1055
      %v1073 = vadd.f32 %v948, %v1019
      %v1074 = vadd.f32 %v949, %v1021
      %v1075 = vadd.f32 %v950, %v1024
      %v1076 = vadd.f32 %v951, %v1026
      %v1077 = vadd.f32 %v952, %v1029
      %v1078 = vadd.f32 %v953, %v1031
      %v1079 = vadd.f32 %v954, %v1034
      %v1080 = vadd.f32 %v955, %v1036
      %v1081 = vadd.f32 %v956, %v1039
      %v1082 = vadd.f32 %v957, %v1041
      %v1083 = vadd.f32 %v958, %v1044
      %v1084 = vadd.f32 %v959, %v1046
      %v1085 = vadd.f32 %v960, %v1049
      %v1086 = vadd.f32 %v961, %v1051
      %v1087 = vadd.f32 %v962, %v1054
      %v1088 = vadd.f32 %v963, %v1056
      %v1089 = vlaneseq
      %v1090 = vshrl.u32 %v1089, 7
      %v1091 = vsub.s32 2, %v1090
      %v1092 = vrot.slane %v942, %v1091
      %v1093 = vmul.f32 %v912, %v1092
      %v1094 = vmul.f32 %v913, %v1092
      %v1095 = vmul.f32 %v914, %v1092
      %v1096 = vmul.f32 %v915, %v1092
      %v1097 = vmul.f32 %v916, %v1092
      %v1098 = vmul.f32 %v917, %v1092
      %v1099 = vmul.f32 %v918, %v1092
      %v1100 = vmul.f32 %v919, %v1092
      %v1101 = vmul.f32 %v920, %v1092
      %v1102 = vmul.f32 %v921, %v1092
      %v1103 = vmul.f32 %v922, %v1092
      %v1104 = vmul.f32 %v923, %v1092
      %v1105 = vmul.f32 %v924, %v1092
      %v1106 = vmul.f32 %v925, %v1092
      %v1107 = vmul.f32 %v926, %v1092
      %v1108 = vmul.f32 %v927, %v1092
      %v1109 = vmul.f32 %v928, %v1092
      %v1110 = vmul.f32 %v929, %v1092
      %v1111 = vmul.f32 %v930, %v1092
      %v1112 = vmul.f32 %v931, %v1092
      %v1113 = vmul.f32 %v932, %v1092
      %v1114 = vmul.f32 %v933, %v1092
      %v1115 = vmul.f32 %v934, %v1092
      %v1116 = vmul.f32 %v935, %v1092
      %vm1141 = vcmask 1045504
      %v1142 = vrot.slane %v1093, 2
      %v1143 = vrot.slane %v1094, 2
      %v1144 = vsel %vm1141, %v1142, %v1143
      %v1145 = vrot.slane %v1095, 2
      %v1146 = vsel %vm1141, %v1143, %v1145
      %v1147 = vrot.slane %v1096, 2
      %v1148 = vrot.slane %v1097, 2
      %v1149 = vsel %vm1141, %v1147, %v1148
      %v1150 = vrot.slane %v1098, 2
      %v1151 = vsel %vm1141, %v1148, %v1150
      %v1152 = vrot.slane %v1099, 2
      %v1153 = vrot.slane %v1100, 2
      %v1154 = vsel %vm1141, %v1152, %v1153
      %v1155 = vrot.slane %v1101, 2
      %v1156 = vsel %vm1141, %v1153, %v1155
      %v1157 = vrot.slane %v1102, 2
      %v1158 = vrot.slane %v1103, 2
      %v1159 = vsel %vm1141, %v1157, %v1158
      %v1160 = vrot.slane %v1104, 2
      %v1161 = vsel %vm1141, %v1158, %v1160
      %v1162 = vrot.slane %v1105, 2
      %v1163 = vrot.slane %v1106, 2
      %v1164 = vsel %vm1141, %v1162, %v1163
      %v1165 = vrot.slane %v1107, 2
      %v1166 = vsel %vm1141, %v1163, %v1165
      %v1167 = vrot.slane %v1108, 2
      %v1168 = vrot.slane %v1109, 2
      %v1169 = vsel %vm1141, %v1167, %v1168
      %v1170 = vrot.slane %v1110, 2
      %v1171 = vsel %vm1141, %v1168, %v1170
      %v1172 = vrot.slane %v1111, 2
      %v1173 = vrot.slane %v1112, 2
      %v1174 = vsel %vm1141, %v1172, %v1173
      %v1175 = vrot.slane %v1113, 2
      %v1176 = vsel %vm1141, %v1173, %v1175
      %v1177 = vrot.slane %v1114, 2
      %v1178 = vrot.slane %v1115, 2
      %v1179 = vsel %vm1141, %v1177, %v1178
      %v1180 = vrot.slane %v1116, 2
      %v1181 = vsel %vm1141, %v1178, %v1180
      %v1198 = vadd.f32 %v1073, %v1144
      %v1199 = vadd.f32 %v1074, %v1146
      %v1200 = vadd.f32 %v1075, %v1149
      %v1201 = vadd.f32 %v1076, %v1151
      %v1202 = vadd.f32 %v1077, %v1154
      %v1203 = vadd.f32 %v1078, %v1156
      %v1204 = vadd.f32 %v1079, %v1159
      %v1205 = vadd.f32 %v1080, %v1161
      %v1206 = vadd.f32 %v1081, %v1164
      %v1207 = vadd.f32 %v1082, %v1166
      %v1208 = vadd.f32 %v1083, %v1169
      %v1209 = vadd.f32 %v1084, %v1171
      %v1210 = vadd.f32 %v1085, %v1174
      %v1211 = vadd.f32 %v1086, %v1176
      %v1212 = vadd.f32 %v1087, %v1179
      %v1213 = vadd.f32 %v1088, %v1181
      %v1214 = vlaneseq
      %v1215 = vshrl.u32 %v1214, 7
      %v1216 = vsub.s32 3, %v1215
      %v1217 = vrot.slane %v942, %v1216
      %v1218 = vmul.f32 %v915, %v1217
      %v1219 = vmul.f32 %v916, %v1217
      %v1220 = vmul.f32 %v918, %v1217
      %v1221 = vmul.f32 %v919, %v1217
      %v1222 = vmul.f32 %v921, %v1217
      %v1223 = vmul.f32 %v922, %v1217
      %v1224 = vmul.f32 %v924, %v1217
      %v1225 = vmul.f32 %v925, %v1217
      %v1226 = vmul.f32 %v927, %v1217
      %v1227 = vmul.f32 %v928, %v1217
      %v1228 = vmul.f32 %v930, %v1217
      %v1229 = vmul.f32 %v931, %v1217
      %v1230 = vmul.f32 %v933, %v1217
      %v1231 = vmul.f32 %v934, %v1217
      %v1232 = vmul.f32 %v936, %v1217
      %v1233 = vmul.f32 %v937, %v1217
      %v1234 = vadd.f32 %v1198, %v1218
      %v1235 = vadd.f32 %v1199, %v1219
      %v1236 = vadd.f32 %v1200, %v1220
      %v1237 = vadd.f32 %v1201, %v1221
      %v1238 = vadd.f32 %v1202, %v1222
      %v1239 = vadd.f32 %v1203, %v1223
      %v1240 = vadd.f32 %v1204, %v1224
      %v1241 = vadd.f32 %v1205, %v1225
      %v1242 = vadd.f32 %v1206, %v1226
      %v1243 = vadd.f32 %v1207, %v1227
      %v1244 = vadd.f32 %v1208, %v1228
      %v1245 = vadd.f32 %v1209, %v1229
      %v1246 = vadd.f32 %v1210, %v1230
      %v1247 = vadd.f32 %v1211, %v1231
      %v1248 = vadd.f32 %v1212, %v1232
      %v1249 = vadd.f32 %v1213, %v1233
      %v1250 = vlaneseq
      %v1251 = vshrl.u32 %v1250, 7
      %v1252 = vsub.s32 4, %v1251
      %v1253 = vrot.slane %v942, %v1252
      %v1254 = vmul.f32 %v915, %v1253
      %v1255 = vmul.f32 %v916, %v1253
      %v1256 = vmul.f32 %v917, %v1253
      %v1257 = vmul.f32 %v918, %v1253
      %v1258 = vmul.f32 %v919, %v1253
      %v1259 = vmul.f32 %v920, %v1253
      %v1260 = vmul.f32 %v921, %v1253
      %v1261 = vmul.f32 %v922, %v1253
      %v1262 = vmul.f32 %v923, %v1253
      %v1263 = vmul.f32 %v924, %v1253
      %v1264 = vmul.f32 %v925, %v1253
      %v1265 = vmul.f32 %v926, %v1253
      %v1266 = vmul.f32 %v927, %v1253
      %v1267 = vmul.f32 %v928, %v1253
      %v1268 = vmul.f32 %v929, %v1253
      %v1269 = vmul.f32 %v930, %v1253
      %v1270 = vmul.f32 %v931, %v1253
      %v1271 = vmul.f32 %v932, %v1253
      %v1272 = vmul.f32 %v933, %v1253
      %v1273 = vmul.f32 %v934, %v1253
      %v1274 = vmul.f32 %v935, %v1253
      %v1275 = vmul.f32 %v936, %v1253
      %v1276 = vmul.f32 %v937, %v1253
      %v1277 = vmul.f32 %v938, %v1253
      %v1302 = vrot.slane %v1254, 1
      %v1303 = vrot.slane %v1255, 1
      %v1304 = vsel %vm1016, %v1302, %v1303
      %v1305 = vrot.slane %v1256, 1
      %v1306 = vsel %vm1016, %v1303, %v1305
      %v1307 = vrot.slane %v1257, 1
      %v1308 = vrot.slane %v1258, 1
      %v1309 = vsel %vm1016, %v1307, %v1308
      %v1310 = vrot.slane %v1259, 1
      %v1311 = vsel %vm1016, %v1308, %v1310
      %v1312 = vrot.slane %v1260, 1
      %v1313 = vrot.slane %v1261, 1
      %v1314 = vsel %vm1016, %v1312, %v1313
      %v1315 = vrot.slane %v1262, 1
      %v1316 = vsel %vm1016, %v1313, %v1315
      %v1317 = vrot.slane %v1263, 1
      %v1318 = vrot.slane %v1264, 1
      %v1319 = vsel %vm1016, %v1317, %v1318
      %v1320 = vrot.slane %v1265, 1
      %v1321 = vsel %vm1016, %v1318, %v1320
      %v1322 = vrot.slane %v1266, 1
      %v1323 = vrot.slane %v1267, 1
      %v1324 = vsel %vm1016, %v1322, %v1323
      %v1325 = vrot.slane %v1268, 1
      %v1326 = vsel %vm1016, %v1323, %v1325
      %v1327 = vrot.slane %v1269, 1
      %v1328 = vrot.slane %v1270, 1
      %v1329 = vsel %vm1016, %v1327, %v1328
      %v1330 = vrot.slane %v1271, 1
      %v1331 = vsel %vm1016, %v1328, %v1330
      %v1332 = vrot.slane %v1272, 1
      %v1333 = vrot.slane %v1273, 1
      %v1334 = vsel %vm1016, %v1332, %v1333
      %v1335 = vrot.slane %v1274, 1
      %v1336 = vsel %vm1016, %v1333, %v1335
      %v1337 = vrot.slane %v1275, 1
      %v1338 = vrot.slane %v1276, 1
      %v1339 = vsel %vm1016, %v1337, %v1338
      %v1340 = vrot.slane %v1277, 1
      %v1341 = vsel %vm1016, %v1338, %v1340
      %v1358 = vadd.f32 %v1234, %v1304
      %v1359 = vadd.f32 %v1235, %v1306
      %v1360 = vadd.f32 %v1236, %v1309
      %v1361 = vadd.f32 %v1237, %v1311
      %v1362 = vadd.f32 %v1238, %v1314
      %v1363 = vadd.f32 %v1239, %v1316
      %v1364 = vadd.f32 %v1240, %v1319
      %v1365 = vadd.f32 %v1241, %v1321
      %v1366 = vadd.f32 %v1242, %v1324
      %v1367 = vadd.f32 %v1243, %v1326
      %v1368 = vadd.f32 %v1244, %v1329
      %v1369 = vadd.f32 %v1245, %v1331
      %v1370 = vadd.f32 %v1246, %v1334
      %v1371 = vadd.f32 %v1247, %v1336
      %v1372 = vadd.f32 %v1248, %v1339
      %v1373 = vadd.f32 %v1249, %v1341
      %v1374 = vlaneseq
      %v1375 = vshrl.u32 %v1374, 7
      %v1376 = vsub.s32 5, %v1375
      %v1377 = vrot.slane %v942, %v1376
      %v1378 = vmul.f32 %v915, %v1377
      %v1379 = vmul.f32 %v916, %v1377
      %v1380 = vmul.f32 %v917, %v1377
      %v1381 = vmul.f32 %v918, %v1377
      %v1382 = vmul.f32 %v919, %v1377
      %v1383 = vmul.f32 %v920, %v1377
      %v1384 = vmul.f32 %v921, %v1377
      %v1385 = vmul.f32 %v922, %v1377
      %v1386 = vmul.f32 %v923, %v1377
      %v1387 = vmul.f32 %v924, %v1377
      %v1388 = vmul.f32 %v925, %v1377
      %v1389 = vmul.f32 %v926, %v1377
      %v1390 = vmul.f32 %v927, %v1377
      %v1391 = vmul.f32 %v928, %v1377
      %v1392 = vmul.f32 %v929, %v1377
      %v1393 = vmul.f32 %v930, %v1377
      %v1394 = vmul.f32 %v931, %v1377
      %v1395 = vmul.f32 %v932, %v1377
      %v1396 = vmul.f32 %v933, %v1377
      %v1397 = vmul.f32 %v934, %v1377
      %v1398 = vmul.f32 %v935, %v1377
      %v1399 = vmul.f32 %v936, %v1377
      %v1400 = vmul.f32 %v937, %v1377
      %v1401 = vmul.f32 %v938, %v1377
      %v1426 = vrot.slane %v1378, 2
      %v1427 = vrot.slane %v1379, 2
      %v1428 = vsel %vm1141, %v1426, %v1427
      %v1429 = vrot.slane %v1380, 2
      %v1430 = vsel %vm1141, %v1427, %v1429
      %v1431 = vrot.slane %v1381, 2
      %v1432 = vrot.slane %v1382, 2
      %v1433 = vsel %vm1141, %v1431, %v1432
      %v1434 = vrot.slane %v1383, 2
      %v1435 = vsel %vm1141, %v1432, %v1434
      %v1436 = vrot.slane %v1384, 2
      %v1437 = vrot.slane %v1385, 2
      %v1438 = vsel %vm1141, %v1436, %v1437
      %v1439 = vrot.slane %v1386, 2
      %v1440 = vsel %vm1141, %v1437, %v1439
      %v1441 = vrot.slane %v1387, 2
      %v1442 = vrot.slane %v1388, 2
      %v1443 = vsel %vm1141, %v1441, %v1442
      %v1444 = vrot.slane %v1389, 2
      %v1445 = vsel %vm1141, %v1442, %v1444
      %v1446 = vrot.slane %v1390, 2
      %v1447 = vrot.slane %v1391, 2
      %v1448 = vsel %vm1141, %v1446, %v1447
      %v1449 = vrot.slane %v1392, 2
      %v1450 = vsel %vm1141, %v1447, %v1449
      %v1451 = vrot.slane %v1393, 2
      %v1452 = vrot.slane %v1394, 2
      %v1453 = vsel %vm1141, %v1451, %v1452
      %v1454 = vrot.slane %v1395, 2
      %v1455 = vsel %vm1141, %v1452, %v1454
      %v1456 = vrot.slane %v1396, 2
      %v1457 = vrot.slane %v1397, 2
      %v1458 = vsel %vm1141, %v1456, %v1457
      %v1459 = vrot.slane %v1398, 2
      %v1460 = vsel %vm1141, %v1457, %v1459
      %v1461 = vrot.slane %v1399, 2
      %v1462 = vrot.slane %v1400, 2
      %v1463 = vsel %vm1141, %v1461, %v1462
      %v1464 = vrot.slane %v1401, 2
      %v1465 = vsel %vm1141, %v1462, %v1464
      %v1482 = vadd.f32 %v1358, %v1428
      %v1483 = vadd.f32 %v1359, %v1430
      %v1484 = vadd.f32 %v1360, %v1433
      %v1485 = vadd.f32 %v1361, %v1435
      %v1486 = vadd.f32 %v1362, %v1438
      %v1487 = vadd.f32 %v1363, %v1440
      %v1488 = vadd.f32 %v1364, %v1443
      %v1489 = vadd.f32 %v1365, %v1445
      %v1490 = vadd.f32 %v1366, %v1448
      %v1491 = vadd.f32 %v1367, %v1450
      %v1492 = vadd.f32 %v1368, %v1453
      %v1493 = vadd.f32 %v1369, %v1455
      %v1494 = vadd.f32 %v1370, %v1458
      %v1495 = vadd.f32 %v1371, %v1460
      %v1496 = vadd.f32 %v1372, %v1463
      %v1497 = vadd.f32 %v1373, %v1465
      %v1498 = vlaneseq
      %v1499 = vshrl.u32 %v1498, 7
      %v1500 = vsub.s32 6, %v1499
      %v1501 = vrot.slane %v942, %v1500
      %v1502 = vmul.f32 %v918, %v1501
      %v1503 = vmul.f32 %v919, %v1501
      %v1504 = vmul.f32 %v921, %v1501
      %v1505 = vmul.f32 %v922, %v1501
      %v1506 = vmul.f32 %v924, %v1501
      %v1507 = vmul.f32 %v925, %v1501
      %v1508 = vmul.f32 %v927, %v1501
      %v1509 = vmul.f32 %v928, %v1501
      %v1510 = vmul.f32 %v930, %v1501
      %v1511 = vmul.f32 %v931, %v1501
      %v1512 = vmul.f32 %v933, %v1501
      %v1513 = vmul.f32 %v934, %v1501
      %v1514 = vmul.f32 %v936, %v1501
      %v1515 = vmul.f32 %v937, %v1501
      %v1516 = vmul.f32 %v939, %v1501
      %v1517 = vmul.f32 %v940, %v1501
      %v1518 = vadd.f32 %v1482, %v1502
      %v1519 = vadd.f32 %v1483, %v1503
      %v1520 = vadd.f32 %v1484, %v1504
      %v1521 = vadd.f32 %v1485, %v1505
      %v1522 = vadd.f32 %v1486, %v1506
      %v1523 = vadd.f32 %v1487, %v1507
      %v1524 = vadd.f32 %v1488, %v1508
      %v1525 = vadd.f32 %v1489, %v1509
      %v1526 = vadd.f32 %v1490, %v1510
      %v1527 = vadd.f32 %v1491, %v1511
      %v1528 = vadd.f32 %v1492, %v1512
      %v1529 = vadd.f32 %v1493, %v1513
      %v1530 = vadd.f32 %v1494, %v1514
      %v1531 = vadd.f32 %v1495, %v1515
      %v1532 = vadd.f32 %v1496, %v1516
      %v1533 = vadd.f32 %v1497, %v1517
      %v1534 = vlaneseq
      %v1535 = vshrl.u32 %v1534, 7
      %v1536 = vsub.s32 7, %v1535
      %v1537 = vrot.slane %v942, %v1536
      %v1538 = vmul.f32 %v918, %v1537
      %v1539 = vmul.f32 %v919, %v1537
      %v1540 = vmul.f32 %v920, %v1537
      %v1541 = vmul.f32 %v921, %v1537
      %v1542 = vmul.f32 %v922, %v1537
      %v1543 = vmul.f32 %v923, %v1537
      %v1544 = vmul.f32 %v924, %v1537
      %v1545 = vmul.f32 %v925, %v1537
      %v1546 = vmul.f32 %v926, %v1537
      %v1547 = vmul.f32 %v927, %v1537
      %v1548 = vmul.f32 %v928, %v1537
      %v1549 = vmul.f32 %v929, %v1537
      %v1550 = vmul.f32 %v930, %v1537
      %v1551 = vmul.f32 %v931, %v1537
      %v1552 = vmul.f32 %v932, %v1537
      %v1553 = vmul.f32 %v933, %v1537
      %v1554 = vmul.f32 %v934, %v1537
      %v1555 = vmul.f32 %v935, %v1537
      %v1556 = vmul.f32 %v936, %v1537
      %v1557 = vmul.f32 %v937, %v1537
      %v1558 = vmul.f32 %v938, %v1537
      %v1559 = vmul.f32 %v939, %v1537
      %v1560 = vmul.f32 %v940, %v1537
      %v1561 = vmul.f32 %v941, %v1537
      %v1586 = vrot.slane %v1538, 1
      %v1587 = vrot.slane %v1539, 1
      %v1588 = vsel %vm1016, %v1586, %v1587
      %v1589 = vrot.slane %v1540, 1
      %v1590 = vsel %vm1016, %v1587, %v1589
      %v1591 = vrot.slane %v1541, 1
      %v1592 = vrot.slane %v1542, 1
      %v1593 = vsel %vm1016, %v1591, %v1592
      %v1594 = vrot.slane %v1543, 1
      %v1595 = vsel %vm1016, %v1592, %v1594
      %v1596 = vrot.slane %v1544, 1
      %v1597 = vrot.slane %v1545, 1
      %v1598 = vsel %vm1016, %v1596, %v1597
      %v1599 = vrot.slane %v1546, 1
      %v1600 = vsel %vm1016, %v1597, %v1599
      %v1601 = vrot.slane %v1547, 1
      %v1602 = vrot.slane %v1548, 1
      %v1603 = vsel %vm1016, %v1601, %v1602
      %v1604 = vrot.slane %v1549, 1
      %v1605 = vsel %vm1016, %v1602, %v1604
      %v1606 = vrot.slane %v1550, 1
      %v1607 = vrot.slane %v1551, 1
      %v1608 = vsel %vm1016, %v1606, %v1607
      %v1609 = vrot.slane %v1552, 1
      %v1610 = vsel %vm1016, %v1607, %v1609
      %v1611 = vrot.slane %v1553, 1
      %v1612 = vrot.slane %v1554, 1
      %v1613 = vsel %vm1016, %v1611, %v1612
      %v1614 = vrot.slane %v1555, 1
      %v1615 = vsel %vm1016, %v1612, %v1614
      %v1616 = vrot.slane %v1556, 1
      %v1617 = vrot.slane %v1557, 1
      %v1618 = vsel %vm1016, %v1616, %v1617
      %v1619 = vrot.slane %v1558, 1
      %v1620 = vsel %vm1016, %v1617, %v1619
      %v1621 = vrot.slane %v1559, 1
      %v1622 = vrot.slane %v1560, 1
      %v1623 = vsel %vm1016, %v1621, %v1622
      %v1624 = vrot.slane %v1561, 1
      %v1625 = vsel %vm1016, %v1622, %v1624
      %v1642 = vadd.f32 %v1518, %v1588
      %v1643 = vadd.f32 %v1519, %v1590
      %v1644 = vadd.f32 %v1520, %v1593
      %v1645 = vadd.f32 %v1521, %v1595
      %v1646 = vadd.f32 %v1522, %v1598
      %v1647 = vadd.f32 %v1523, %v1600
      %v1648 = vadd.f32 %v1524, %v1603
      %v1649 = vadd.f32 %v1525, %v1605
      %v1650 = vadd.f32 %v1526, %v1608
      %v1651 = vadd.f32 %v1527, %v1610
      %v1652 = vadd.f32 %v1528, %v1613
      %v1653 = vadd.f32 %v1529, %v1615
      %v1654 = vadd.f32 %v1530, %v1618
      %v1655 = vadd.f32 %v1531, %v1620
      %v1656 = vadd.f32 %v1532, %v1623
      %v1657 = vadd.f32 %v1533, %v1625
      %v1658 = vlaneseq
      %v1659 = vshrl.u32 %v1658, 7
      %v1660 = vsub.s32 0, %v1659
      %v1661 = vrot.slane %v943, %v1660
      %v1662 = vmul.f32 %v918, %v1661
      %v1663 = vmul.f32 %v919, %v1661
      %v1664 = vmul.f32 %v920, %v1661
      %v1665 = vmul.f32 %v921, %v1661
      %v1666 = vmul.f32 %v922, %v1661
      %v1667 = vmul.f32 %v923, %v1661
      %v1668 = vmul.f32 %v924, %v1661
      %v1669 = vmul.f32 %v925, %v1661
      %v1670 = vmul.f32 %v926, %v1661
      %v1671 = vmul.f32 %v927, %v1661
      %v1672 = vmul.f32 %v928, %v1661
      %v1673 = vmul.f32 %v929, %v1661
      %v1674 = vmul.f32 %v930, %v1661
      %v1675 = vmul.f32 %v931, %v1661
      %v1676 = vmul.f32 %v932, %v1661
      %v1677 = vmul.f32 %v933, %v1661
      %v1678 = vmul.f32 %v934, %v1661
      %v1679 = vmul.f32 %v935, %v1661
      %v1680 = vmul.f32 %v936, %v1661
      %v1681 = vmul.f32 %v937, %v1661
      %v1682 = vmul.f32 %v938, %v1661
      %v1683 = vmul.f32 %v939, %v1661
      %v1684 = vmul.f32 %v940, %v1661
      %v1685 = vmul.f32 %v941, %v1661
      %v1710 = vrot.slane %v1662, 2
      %v1711 = vrot.slane %v1663, 2
      %v1712 = vsel %vm1141, %v1710, %v1711
      %v1713 = vrot.slane %v1664, 2
      %v1714 = vsel %vm1141, %v1711, %v1713
      %v1715 = vrot.slane %v1665, 2
      %v1716 = vrot.slane %v1666, 2
      %v1717 = vsel %vm1141, %v1715, %v1716
      %v1718 = vrot.slane %v1667, 2
      %v1719 = vsel %vm1141, %v1716, %v1718
      %v1720 = vrot.slane %v1668, 2
      %v1721 = vrot.slane %v1669, 2
      %v1722 = vsel %vm1141, %v1720, %v1721
      %v1723 = vrot.slane %v1670, 2
      %v1724 = vsel %vm1141, %v1721, %v1723
      %v1725 = vrot.slane %v1671, 2
      %v1726 = vrot.slane %v1672, 2
      %v1727 = vsel %vm1141, %v1725, %v1726
      %v1728 = vrot.slane %v1673, 2
      %v1729 = vsel %vm1141, %v1726, %v1728
      %v1730 = vrot.slane %v1674, 2
      %v1731 = vrot.slane %v1675, 2
      %v1732 = vsel %vm1141, %v1730, %v1731
      %v1733 = vrot.slane %v1676, 2
      %v1734 = vsel %vm1141, %v1731, %v1733
      %v1735 = vrot.slane %v1677, 2
      %v1736 = vrot.slane %v1678, 2
      %v1737 = vsel %vm1141, %v1735, %v1736
      %v1738 = vrot.slane %v1679, 2
      %v1739 = vsel %vm1141, %v1736, %v1738
      %v1740 = vrot.slane %v1680, 2
      %v1741 = vrot.slane %v1681, 2
      %v1742 = vsel %vm1141, %v1740, %v1741
      %v1743 = vrot.slane %v1682, 2
      %v1744 = vsel %vm1141, %v1741, %v1743
      %v1745 = vrot.slane %v1683, 2
      %v1746 = vrot.slane %v1684, 2
      %v1747 = vsel %vm1141, %v1745, %v1746
      %v1748 = vrot.slane %v1685, 2
      %v1749 = vsel %vm1141, %v1746, %v1748
      %v1766 = vadd.f32 %v1642, %v1712
      %v1767 = vadd.f32 %v1643, %v1714
      %v1768 = vadd.f32 %v1644, %v1717
      %v1769 = vadd.f32 %v1645, %v1719
      %v1770 = vadd.f32 %v1646, %v1722
      %v1771 = vadd.f32 %v1647, %v1724
      %v1772 = vadd.f32 %v1648, %v1727
      %v1773 = vadd.f32 %v1649, %v1729
      %v1774 = vadd.f32 %v1650, %v1732
      %v1775 = vadd.f32 %v1651, %v1734
      %v1776 = vadd.f32 %v1652, %v1737
      %v1777 = vadd.f32 %v1653, %v1739
      %v1778 = vadd.f32 %v1654, %v1742
      %v1779 = vadd.f32 %v1655, %v1744
      %v1780 = vadd.f32 %v1656, %v1747
      %v1781 = vadd.f32 %v1657, %v1749
      %v1782 = vld [vmem:[%s5] sm:$0x1]
      %v1784 = vlaneseq
      %v1785 = vshrl.u32 %v1784, 7
      %v1786 = vsub.s32 0, %v1785
      %v1787 = vrot.slane %v1782, %v1786
      %v1789 = vmul.f32 %v1766, %v1787
      %v1790 = vmul.f32 %v1767, %v1787
      %v1791 = vmul.f32 %v1768, %v1787
      %v1792 = vmul.f32 %v1769, %v1787
      %v1793 = vmul.f32 %v1770, %v1787
      %v1794 = vmul.f32 %v1771, %v1787
      %v1795 = vmul.f32 %v1772, %v1787
      %v1796 = vmul.f32 %v1773, %v1787
      %v1797 = vmul.f32 %v1774, %v1787
      %v1798 = vmul.f32 %v1775, %v1787
      %v1799 = vmul.f32 %v1776, %v1787
      %v1800 = vmul.f32 %v1777, %v1787
      %v1801 = vmul.f32 %v1778, %v1787
      %v1802 = vmul.f32 %v1779, %v1787
      %v1803 = vmul.f32 %v1780, %v1787
      %v1804 = vmul.f32 %v1781, %v1787
      %v1805 = vld [vmem:[%s6] sm:$0x1]
      %v1807 = vlaneseq
      %v1808 = vshrl.u32 %v1807, 7
      %v1809 = vsub.s32 0, %v1808
      %v1810 = vrot.slane %v1805, %v1809
      %v1812 = vadd.f32 %v1789, %v1810
      %v1813 = vadd.f32 %v1790, %v1810
      %v1814 = vadd.f32 %v1791, %v1810
      %v1815 = vadd.f32 %v1792, %v1810
      %v1816 = vadd.f32 %v1793, %v1810
      %v1817 = vadd.f32 %v1794, %v1810
      %v1818 = vadd.f32 %v1795, %v1810
      %v1819 = vadd.f32 %v1796, %v1810
      %v1820 = vadd.f32 %v1797, %v1810
      %v1821 = vadd.f32 %v1798, %v1810
      %v1822 = vadd.f32 %v1799, %v1810
      %v1823 = vadd.f32 %v1800, %v1810
      %v1824 = vadd.f32 %v1801, %v1810
      %v1825 = vadd.f32 %v1802, %v1810
      %v1826 = vadd.f32 %v1803, %v1810
      %v1827 = vadd.f32 %v1804, %v1810
      %v1828 = vmax.f32 %v1812, 0.0
      %v1829 = vmax.f32 %v1813, 0.0
      %v1830 = vmax.f32 %v1814, 0.0
      %v1831 = vmax.f32 %v1815, 0.0
      %v1832 = vmax.f32 %v1816, 0.0
      %v1833 = vmax.f32 %v1817, 0.0
      %v1834 = vmax.f32 %v1818, 0.0
      %v1835 = vmax.f32 %v1819, 0.0
      %v1836 = vmax.f32 %v1820, 0.0
      %v1837 = vmax.f32 %v1821, 0.0
      %v1838 = vmax.f32 %v1822, 0.0
      %v1839 = vmax.f32 %v1823, 0.0
      %v1840 = vmax.f32 %v1824, 0.0
      %v1841 = vmax.f32 %v1825, 0.0
      %v1842 = vmax.f32 %v1826, 0.0
      %v1843 = vmax.f32 %v1827, 0.0
      %v1844 = vpack.c.bf16 %v1829, %v1828
      %v1845 = vpack.c.bf16 %v1831, %v1830
      %v1846 = vpack.c.bf16 %v1833, %v1832
      %v1847 = vpack.c.bf16 %v1835, %v1834
      %v1848 = vpack.c.bf16 %v1837, %v1836
      %v1849 = vpack.c.bf16 %v1839, %v1838
      %v1850 = vpack.c.bf16 %v1841, %v1840
      %v1851 = vpack.c.bf16 %v1843, %v1842
      %v1852 = vld [vmem:[%s7] sm:$0xf]
      %v1853 = vld [vmem:[%s7 + $0x4] sm:$0xf]
      %v1854 = vld [vmem:[%s7 + $0x8] sm:$0xf]
      %v1858 = vunpack.c.l.b16 %v1852
      %v1859 = vunpack.c.l.b16 %v1853
      %v1860 = vunpack.c.l.b16 %v1854
      %v1861 = vpack.c.b16 %v1859, %v1858
      %v1862 = vpack.c.b16 %v1860, %v1860
      %vm1864 = vcmask 195584
      %v1866 = vsel %vm1864, %v1844, 0
      %v1869 = vsel %vm1864, %v1845, 0
      %v1872 = vsel %vm1864, %v1846, 0
      %v1875 = vsel %vm1864, %v1847, 0
      %v1878 = vsel %vm1864, %v1848, 0
      %v1881 = vsel %vm1864, %v1849, 0
      %v1884 = vsel %vm1864, %v1850, 0
      %v1887 = vsel %vm1864, %v1851, 0
      %vm1889 = vcmask 1043456
      %v1891 = vsel %vm1889, %v1862, 0
      %1893 = vmatprep.subr.bf16.mxu0 0
      %1894 = vmatpush1.bf16.msra.mxu0 0
      %1895 = vmatprep.subr.bf16.mxu0 0
      %1896 = vmatpush1.bf16.msra.mxu0 0
      %1897 = vmatprep.subr.bf16.mxu0 0
      %1898 = vmatpush1.bf16.msra.mxu0 0
      %1899 = vmatprep.subr.bf16.mxu0 0
      %1900 = vmatpush1.bf16.msra.mxu0 0
      %1901 = vmatprep.subr.bf16.mxu0 0
      %1902 = vmatpush1.bf16.msra.mxu0 0
      %1903 = vmatprep.subr.bf16.mxu0 0
      %1904 = vmatpush1.bf16.msra.mxu0 0
      %1905 = vmatprep.subr.bf16.mxu0 0
      %1906 = vmatpush1.bf16.msra.mxu0 %v1891
      %1907 = vmatprep.subr.bf16.mxu0 0
      %1908 = vmatpush1.bf16.msra.mxu0 %v1861
      %1909 = vmatprep.subr.bf16.mxu0 0
      %1910 = vmatpush2.bf16.msra.mxu0 0
      %1911 = vmatprep.subr.bf16.mxu0 0
      %1912 = vmatpush2.bf16.msra.mxu0 0
      %1913 = vmatprep.subr.bf16.mxu0 0
      %1914 = vmatpush2.bf16.msra.mxu0 0
      %1915 = vmatprep.subr.bf16.mxu0 0
      %1916 = vmatpush2.bf16.msra.mxu0 0
      %1917 = vmatprep.subr.bf16.mxu0 0
      %1918 = vmatpush2.bf16.msra.mxu0 0
      %1919 = vmatprep.subr.bf16.mxu0 0
      %1920 = vmatpush2.bf16.msra.mxu0 0
      %1921 = vmatprep.subr.bf16.mxu0 0
      %1922 = vmatpush2.bf16.msra.mxu0 0
      %1923 = vmatprep.subr.bf16.mxu0 0
      %1924 = vmatpush2.bf16.msra.mxu0 0
      %1925 = vmatprep.mubr.bf16.mxu0 0
      %1926 = vmatmul.mubr.bf16.gmra.mxu0 %v1866
      %v1927 = vpop.f32.mrf.mxu0
      %v1928 = vadd.f32 0.0, %v1927
      %v1929 = vpop.f32.mrf.mxu0
      %v1930 = vpop.f32.mrf.mxu0
      %v1931 = vadd.f32 0.0, %v1930
      %v1932 = vpop.f32.mrf.mxu0
      %1933 = vmatprep.mubr.bf16.mxu0 0
      %1934 = vmatmul.mubr.bf16.gmra.mxu0 %v1869
      %v1935 = vpop.f32.mrf.mxu0
      %v1936 = vadd.f32 0.0, %v1935
      %v1937 = vpop.f32.mrf.mxu0
      %v1938 = vpop.f32.mrf.mxu0
      %v1939 = vadd.f32 0.0, %v1938
      %v1940 = vpop.f32.mrf.mxu0
      %1941 = vmatprep.mubr.bf16.mxu0 0
      %1942 = vmatmul.mubr.bf16.gmra.mxu0 %v1872
      %v1943 = vpop.f32.mrf.mxu0
      %v1944 = vadd.f32 0.0, %v1943
      %v1945 = vpop.f32.mrf.mxu0
      %v1946 = vpop.f32.mrf.mxu0
      %v1947 = vadd.f32 0.0, %v1946
      %v1948 = vpop.f32.mrf.mxu0
      %1949 = vmatprep.mubr.bf16.mxu0 0
      %1950 = vmatmul.mubr.bf16.gmra.mxu0 %v1875
      %v1951 = vpop.f32.mrf.mxu0
      %v1952 = vadd.f32 0.0, %v1951
      %v1953 = vpop.f32.mrf.mxu0
      %v1954 = vpop.f32.mrf.mxu0
      %v1955 = vadd.f32 0.0, %v1954
      %v1956 = vpop.f32.mrf.mxu0
      %1957 = vmatprep.mubr.bf16.mxu0 0
      %1958 = vmatmul.mubr.bf16.gmra.mxu0 %v1878
      %v1959 = vpop.f32.mrf.mxu0
      %v1960 = vadd.f32 0.0, %v1959
      %v1961 = vpop.f32.mrf.mxu0
      %v1962 = vpop.f32.mrf.mxu0
      %v1963 = vadd.f32 0.0, %v1962
      %v1964 = vpop.f32.mrf.mxu0
      %1965 = vmatprep.mubr.bf16.mxu0 0
      %1966 = vmatmul.mubr.bf16.gmra.mxu0 %v1881
      %v1967 = vpop.f32.mrf.mxu0
      %v1968 = vadd.f32 0.0, %v1967
      %v1969 = vpop.f32.mrf.mxu0
      %v1970 = vpop.f32.mrf.mxu0
      %v1971 = vadd.f32 0.0, %v1970
      %v1972 = vpop.f32.mrf.mxu0
      %1973 = vmatprep.mubr.bf16.mxu0 0
      %1974 = vmatmul.mubr.bf16.gmra.mxu0 %v1884
      %v1975 = vpop.f32.mrf.mxu0
      %v1976 = vadd.f32 0.0, %v1975
      %v1977 = vpop.f32.mrf.mxu0
      %v1978 = vpop.f32.mrf.mxu0
      %v1979 = vadd.f32 0.0, %v1978
      %v1980 = vpop.f32.mrf.mxu0
      %1981 = vmatprep.mubr.bf16.mxu0 0
      %1982 = vmatmul.mubr.bf16.gmra.mxu0 %v1887
      %v1983 = vpop.f32.mrf.mxu0
      %v1984 = vadd.f32 0.0, %v1983
      %v1985 = vpop.f32.mrf.mxu0
      %v1986 = vpop.f32.mrf.mxu0
      %v1987 = vadd.f32 0.0, %v1986
      %v1988 = vpop.f32.mrf.mxu0
      %1989 = vdwg.mxu0
      %v1990 = vld [vmem:[%s8] sm:$0x1]
      %v1992 = vlaneseq
      %v1993 = vshrl.u32 %v1992, 7
      %v1994 = vsub.s32 0, %v1993
      %v1995 = vrot.slane %v1990, %v1994
      %v1997 = vmul.f32 %v1928, %v1995
      %v1998 = vmul.f32 %v1931, %v1995
      %v1999 = vmul.f32 %v1936, %v1995
      %v2000 = vmul.f32 %v1939, %v1995
      %v2001 = vmul.f32 %v1944, %v1995
      %v2002 = vmul.f32 %v1947, %v1995
      %v2003 = vmul.f32 %v1952, %v1995
      %v2004 = vmul.f32 %v1955, %v1995
      %v2005 = vmul.f32 %v1960, %v1995
      %v2006 = vmul.f32 %v1963, %v1995
      %v2007 = vmul.f32 %v1968, %v1995
      %v2008 = vmul.f32 %v1971, %v1995
      %v2009 = vmul.f32 %v1976, %v1995
      %v2010 = vmul.f32 %v1979, %v1995
      %v2011 = vmul.f32 %v1984, %v1995
      %v2012 = vmul.f32 %v1987, %v1995
      %v2013 = vld [vmem:[%s9] sm:$0x1]
      %v2015 = vlaneseq
      %v2016 = vshrl.u32 %v2015, 7
      %v2017 = vsub.s32 0, %v2016
      %v2018 = vrot.slane %v2013, %v2017
      %v2020 = vadd.f32 %v1997, %v2018
      %v2021 = vadd.f32 %v1998, %v2018
      %v2022 = vadd.f32 %v1999, %v2018
      %v2023 = vadd.f32 %v2000, %v2018
      %v2024 = vadd.f32 %v2001, %v2018
      %v2025 = vadd.f32 %v2002, %v2018
      %v2026 = vadd.f32 %v2003, %v2018
      %v2027 = vadd.f32 %v2004, %v2018
      %v2028 = vadd.f32 %v2005, %v2018
      %v2029 = vadd.f32 %v2006, %v2018
      %v2030 = vadd.f32 %v2007, %v2018
      %v2031 = vadd.f32 %v2008, %v2018
      %v2032 = vadd.f32 %v2009, %v2018
      %v2033 = vadd.f32 %v2010, %v2018
      %v2034 = vadd.f32 %v2011, %v2018
      %v2035 = vadd.f32 %v2012, %v2018
      %s2036 = sadd.s32 %s386, 1
      %s2037 = smul.u32 %s2036, 24
      %s2038 = scalar_lea.vmem %s373, %s2037
      %v2039 = vld [vmem:[%s2038] sm:$0xff]
      %v2040 = vld [vmem:[%s2038 + $0x8] sm:$0xff]
      %v2041 = vld [vmem:[%s2038 + $0x10] sm:$0xff]
      %v2042 = vld [vmem:[%s2038 + $0x18] sm:$0xff]
      %v2043 = vld [vmem:[%s2038 + $0x20] sm:$0xff]
      %v2044 = vld [vmem:[%s2038 + $0x28] sm:$0xff]
      %v2045 = vld [vmem:[%s2038 + $0x30] sm:$0xff]
      %v2046 = vld [vmem:[%s2038 + $0x38] sm:$0xff]
      %v2047 = vld [vmem:[%s2038 + $0x40] sm:$0xff]
      %v2048 = vld [vmem:[%s2038 + $0x48] sm:$0xff]
      %v2049 = vld [vmem:[%s2038 + $0x50] sm:$0xff]
      %v2050 = vld [vmem:[%s2038 + $0x58] sm:$0xff]
      %v2051 = vld [vmem:[%s2038 + $0x60] sm:$0xff]
      %v2052 = vld [vmem:[%s2038 + $0x68] sm:$0xff]
      %v2053 = vld [vmem:[%s2038 + $0x70] sm:$0xff]
      %v2054 = vld [vmem:[%s2038 + $0x78] sm:$0xff]
      %v2055 = vld [vmem:[%s2038 + $0x80] sm:$0xff]
      %v2056 = vld [vmem:[%s2038 + $0x88] sm:$0xff]
      %v2057 = vld [vmem:[%s2038 + $0x90] sm:$0xff]
      %v2058 = vld [vmem:[%s2038 + $0x98] sm:$0xff]
      %v2059 = vld [vmem:[%s2038 + $0xa0] sm:$0xff]
      %v2060 = vld [vmem:[%s2038 + $0xa8] sm:$0xff]
      %v2061 = vld [vmem:[%s2038 + $0xb0] sm:$0xff]
      %v2062 = vld [vmem:[%s2038 + $0xb8] sm:$0xff]
      %v2087 = vrot.slane %v2039, 1
      %v2088 = vrot.slane %v2040, 1
      %v2089 = vsel %vm1016, %v2087, %v2088
      %v2090 = vrot.slane %v2041, 1
      %v2091 = vsel %vm1016, %v2088, %v2090
      %v2092 = vrot.slane %v2042, 1
      %v2093 = vrot.slane %v2043, 1
      %v2094 = vsel %vm1016, %v2092, %v2093
      %v2095 = vrot.slane %v2044, 1
      %v2096 = vsel %vm1016, %v2093, %v2095
      %v2097 = vrot.slane %v2045, 1
      %v2098 = vrot.slane %v2046, 1
      %v2099 = vsel %vm1016, %v2097, %v2098
      %v2100 = vrot.slane %v2047, 1
      %v2101 = vsel %vm1016, %v2098, %v2100
      %v2102 = vrot.slane %v2048, 1
      %v2103 = vrot.slane %v2049, 1
      %v2104 = vsel %vm1016, %v2102, %v2103
      %v2105 = vrot.slane %v2050, 1
      %v2106 = vsel %vm1016, %v2103, %v2105
      %v2107 = vrot.slane %v2051, 1
      %v2108 = vrot.slane %v2052, 1
      %v2109 = vsel %vm1016, %v2107, %v2108
      %v2110 = vrot.slane %v2053, 1
      %v2111 = vsel %vm1016, %v2108, %v2110
      %v2112 = vrot.slane %v2054, 1
      %v2113 = vrot.slane %v2055, 1
      %v2114 = vsel %vm1016, %v2112, %v2113
      %v2115 = vrot.slane %v2056, 1
      %v2116 = vsel %vm1016, %v2113, %v2115
      %v2117 = vrot.slane %v2057, 1
      %v2118 = vrot.slane %v2058, 1
      %v2119 = vsel %vm1016, %v2117, %v2118
      %v2120 = vrot.slane %v2059, 1
      %v2121 = vsel %vm1016, %v2118, %v2120
      %v2122 = vrot.slane %v2060, 1
      %v2123 = vrot.slane %v2061, 1
      %v2124 = vsel %vm1016, %v2122, %v2123
      %v2125 = vrot.slane %v2062, 1
      %v2126 = vsel %vm1016, %v2123, %v2125
      %v2143 = vadd.f32 %v2020, %v2089
      %v2144 = vadd.f32 %v2021, %v2091
      %v2145 = vadd.f32 %v2022, %v2094
      %v2146 = vadd.f32 %v2023, %v2096
      %v2147 = vadd.f32 %v2024, %v2099
      %v2148 = vadd.f32 %v2025, %v2101
      %v2149 = vadd.f32 %v2026, %v2104
      %v2150 = vadd.f32 %v2027, %v2106
      %v2151 = vadd.f32 %v2028, %v2109
      %v2152 = vadd.f32 %v2029, %v2111
      %v2153 = vadd.f32 %v2030, %v2114
      %v2154 = vadd.f32 %v2031, %v2116
      %v2155 = vadd.f32 %v2032, %v2119
      %v2156 = vadd.f32 %v2033, %v2121
      %v2157 = vadd.f32 %v2034, %v2124
      %v2158 = vadd.f32 %v2035, %v2126
      %2159 = vst.msk [vmem:[%s383] sm:$0xff] %vm435, %v2143
      %2160 = vst.msk [vmem:[%s383 + $0x8] sm:$0xff] %vm435, %v2144
      %2161 = vst.msk [vmem:[%s383 + $0x10] sm:$0xff] %vm435, %v2145
      %2162 = vst.msk [vmem:[%s383 + $0x18] sm:$0xff] %vm435, %v2146
      %2163 = vst.msk [vmem:[%s383 + $0x20] sm:$0xff] %vm435, %v2147
      %2164 = vst.msk [vmem:[%s383 + $0x28] sm:$0xff] %vm435, %v2148
      %2165 = vst.msk [vmem:[%s383 + $0x30] sm:$0xff] %vm435, %v2149
      %2166 = vst.msk [vmem:[%s383 + $0x38] sm:$0xff] %vm435, %v2150
      %2167 = vst.msk [vmem:[%s383 + $0x40] sm:$0xff] %vm435, %v2151
      %2168 = vst.msk [vmem:[%s383 + $0x48] sm:$0xff] %vm435, %v2152
      %2169 = vst.msk [vmem:[%s383 + $0x50] sm:$0xff] %vm435, %v2153
      %2170 = vst.msk [vmem:[%s383 + $0x58] sm:$0xff] %vm435, %v2154
      %2171 = vst.msk [vmem:[%s383 + $0x60] sm:$0xff] %vm435, %v2155
      %2172 = vst.msk [vmem:[%s383 + $0x68] sm:$0xff] %vm435, %v2156
      %2173 = vst.msk [vmem:[%s383 + $0x70] sm:$0xff] %vm435, %v2157
      %2174 = vst.msk [vmem:[%s383 + $0x78] sm:$0xff] %vm435, %v2158
      %s2175 = smul.u32 8, %s26
      %p2176 = scmp.lt.s32.totalorder %s25, 1
      %s2177 = scalar_select %p2176, %s25, 1
      %p2178 = scmp.lt.s32.totalorder %s2175, 15
      %s2179 = scalar_select %p2178, %s2175, 15
      %s2180 = smul.addr %s2179, 2
      %s2181 = smul.addr %s2177, 32
      %s2182 = sadd.s32 %s2180, %s2181
      %s2183 = smul.addr %s2182, 8
      %s2184 = scalar_lea.vmem %s10, %s2183
      // Predicated region
      $region61: #{inverted_residual_forward.1} parent=59 // pred_check
        %p2185 = pneg %p268
      $region62: #{inverted_residual_forward.1} parent=59 // pred_check_branch
        %2187 = sbr.rel (%p2185) target = $region64
      $region63: #{inverted_residual_forward.1} parent=59 // pred_region
        %s2188 = smul.u32 8, %s26
      $region64: #{inverted_residual_forward.1} parent=59 // pred_fallthru
        _
    $region60: #{inverted_residual_forward.1} parent=5 // pred_fallthru
      _
    %p2189 = scmp.le.s32.totalorder 2, %s16
    // Predicated region
    $region65: #{inverted_residual_forward.1} parent=5 // pred_check
      %p2190 = pneg %p2189
    $region66: #{inverted_residual_forward.1} parent=5 // pred_check_branch
      %2192 = sbr.rel (%p2190) target = $region68
    $region67: #{inverted_residual_forward.1} parent=5 // pred_region
      %s2193 = ssub.s32 %s16, 2
      // Predicated region
      $region69: #{inverted_residual_forward.1} parent=67 // pred_check
        %p2194 = pneg %p274
      $region70: #{inverted_residual_forward.1} parent=67 // pred_check_branch
        %2196 = sbr.rel (%p2194) target = $region72
      $region71: #{inverted_residual_forward.1} parent=67 // pred_region
        %s2197 = smul.u32 8, %s28
        %p2198 = scmp.lt.s32.totalorder %s27, 1
        %s2199 = scalar_select %p2198, %s27, 1
        %p2200 = scmp.lt.s32.totalorder %s2197, 15
        %s2201 = scalar_select %p2200, %s2197, 15
        %s2202 = smul.addr %s2201, 2
        %s2203 = smul.addr %s2199, 32
        %s2204 = sadd.s32 %s2202, %s2203
        %s2205 = smul.addr %s2204, 8
        %s2206 = scalar_lea.vmem %s10, %s2205
      $region72: #{inverted_residual_forward.1} parent=67 // pred_fallthru
        _
    $region68: #{inverted_residual_forward.1} parent=5 // pred_fallthru
      _
  $region6: #{inverted_residual_forward.1} parent=0 // loop_footer
    %s20 = sadd.s32 1, %s16
  $region7: #{inverted_residual_forward.1} parent=0 // loop_footer_branch
    %15 = sbr.rel target = $region3
  $region8: #{inverted_residual_forward.1} parent=0 // loop_exit
    _

</llo_original>
